<compile_context>
chip_gen: v6e
topology: v6e:2x2x1
jax: 0.10.0
libtpu: 0.0.40
codegen_flags: <defaults>
</compile_context>

<pallas_src>
import math

import jax
import jax.numpy as jnp
from jax.experimental import pallas as pl

# ------------------------- model config (small, synthetic) -------------------
VOCAB = 100
MAX_POS = 16
H = 32            # hidden_size
NH = 2            # num attention heads
DH = H // NH      # head dim
INTER = 64        # intermediate size
LAYERS = 2        # num_hidden_layers
ADAPTER = 16      # adapter_size
LANG_EMB = 8      # language_emb_size (low_rank_dim)

B = 2             # batch
S = 8             # sequence length
P = 4             # number of "word pieces" rows in bert_pieces

T = B * S         # fused-batch token count
LN_EPS = 1e-12
_INV_SQRT2 = 1.0 / math.sqrt(2.0)
NEG_BIG = -1e9    # cross-batch mask; exp underflows to exactly 0 in f32

# --------------------- packed-slab layout (all static offsets) ---------------
# WMAT (bf16, (LAYERS*PAGE_R, PAGE_C)); per-layer page:
#   rows [0:H]               cols [0:3H]             Wq|Wk|Wv (fused)
#   rows [0:H]               cols [C_AO:C_AO+H]      Wao
#   rows [0:H]               cols [C_WI:C_WI+INTER]  Wi
#   rows [0:H]               cols [C_ADW:+ADAPTER]   attn-adapter down
#   rows [0:H]               cols [C_ODW:+ADAPTER]   out-adapter  down
#   rows [R_WO:R_WO+INTER]   cols [0:H]              Wo
#   rows [R_AUW:+ADAPTER]    cols [0:H]              attn-adapter up
#   rows [R_OUW:+ADAPTER]    cols [0:H]              out-adapter  up
C_AO = 3 * H
C_WI = 4 * H
C_ADW = 4 * H + INTER
C_ODW = C_ADW + ADAPTER
R_WO = H
R_AUW = H + INTER
R_OUW = R_AUW + ADAPTER
PAGE_R = H + INTER + 2 * ADAPTER      # 128  (all offsets multiples of 16 for bf16)
PAGE_C = 256                          # 4H + INTER + 2*ADAPTER = 224 -> 2 lane tiles

# VEC (f32, (VEC_R, 128)): one bias / LayerNorm vector per row.
V_EMB_G, V_EMB_B = 0, 1
(V_BQKV, V_BAO, V_LN1G, V_LN1B, V_BI, V_BO,
 V_LN2G, V_LN2B, V_ADB, V_AUB, V_ODB, V_OUB) = range(12)
VPL = 12                              # vector rows per layer (base = 2 + VPL*l)
VEC_R = 32                            # 2 + VPL*LAYERS = 26 -> pad to 32

# DATA (f32, (T, 128))
D_X, D_BIAS, D_PIECES = 0, H, H + T   # embeddings | attn bias (T,T) | pieces (B*P,T)
DATA_C = 128
OUT_C = 128                           # lane-dense output -> full unmasked vector store


def _gelu_exact(x):
    # nn.GELU() default (erf-based, exact)
    return 0.5 * x * (1.0 + jax.lax.erf(x * _INV_SQRT2))


# --------------------------- fused Pallas kernel ------------------------------
def _fused_bert_kernel(data_ref, w_ref, vec_ref, out_ref):
    """Whole forward (both batch elements, all layers, bmm epilogue) fused."""
    f32, bf16 = jnp.float32, jnp.bfloat16

    def vrow(i, width):                       # (1, width) f32 bias / LN vector
        return vec_ref[i:i + 1, 0:width]

    def layer_norm(x, g_row):                 # gamma at g_row, beta at g_row+1
        g, b = vrow(g_row, H), vrow(g_row + 1, H)
        mu = jnp.mean(x, axis=-1, keepdims=True)
        var = jnp.mean((x - mu) ** 2, axis=-1, keepdims=True)
        return (x - mu) * jax.lax.rsqrt(var + LN_EPS) * g + b

    def mm(a, w):                             # bf16 MXU inputs, f32 accumulate
        return jnp.dot(a.astype(bf16), w.astype(bf16),
                       preferred_element_type=f32)

    x = layer_norm(data_ref[:, D_X:D_X + H], V_EMB_G)         # (T, H)
    bias = data_ref[:, D_BIAS:D_BIAS + T]                      # (T, T) block-diag
    pieces = data_ref[0:B * P, D_PIECES:D_PIECES + T]          # (B*P, T) block-diag
    scale = 1.0 / math.sqrt(DH)

    for l in range(LAYERS):
        R = l * PAGE_R
        V = 2 + VPL * l

        # ---- fused Q|K|V projection: one (T,H)@(H,3H) matmul ----
        qkv = mm(x, w_ref[R:R + H, 0:3 * H]) + vrow(V + V_BQKV, 3 * H)

        # ---- per-head attention; heads are static lane sub-slices ----
        ctx_heads = []
        for hh in range(NH):
            q = qkv[:, hh * DH:(hh + 1) * DH]
            k = qkv[:, H + hh * DH:H + (hh + 1) * DH]
            v = qkv[:, 2 * H + hh * DH:2 * H + (hh + 1) * DH]
            s = jax.lax.dot_general(q.astype(bf16), k.astype(bf16),
                                    (((1,), (1,)), ((), ())),
                                    preferred_element_type=f32) * scale + bias
            s = s - jnp.max(s, axis=-1, keepdims=True)
            pr = jnp.exp(s)
            pr = pr * pl.reciprocal(jnp.sum(pr, axis=-1, keepdims=True),
                                    approx=True)
            ctx_heads.append(mm(pr, v))                        # (T, DH)
        ctx = jnp.concatenate(ctx_heads, axis=-1)              # (T, H)

        # ---- attention.output: dense -> PGN adapter -> LN(h + x) ----
        h1 = mm(ctx, w_ref[R:R + H, C_AO:C_AO + H]) + vrow(V + V_BAO, H)
        d1 = _gelu_exact(mm(h1, w_ref[R:R + H, C_ADW:C_ADW + ADAPTER])
                         + vrow(V + V_ADB, ADAPTER))
        h1 = h1 + mm(d1, w_ref[R + R_AUW:R + R_AUW + ADAPTER, 0:H]) + vrow(V + V_AUB, H)
        x = layer_norm(h1 + x, V + V_LN1G)

        # ---- intermediate dense + exact GELU ----
        it = _gelu_exact(mm(x, w_ref[R:R + H, C_WI:C_WI + INTER])
                         + vrow(V + V_BI, INTER))

        # ---- output: dense -> PGN adapter -> LN(h + x) ----
        h2 = mm(it, w_ref[R + R_WO:R + R_WO + INTER, 0:H]) + vrow(V + V_BO, H)
        d2 = _gelu_exact(mm(h2, w_ref[R:R + H, C_ODW:C_ODW + ADAPTER])
                         + vrow(V + V_ODB, ADAPTER))
        h2 = h2 + mm(d2, w_ref[R + R_OUW:R + R_OUW + ADAPTER, 0:H]) + vrow(V + V_OUB, H)
        x = layer_norm(h2 + x, V + V_LN2G)

    # ---- epilogue: torch.bmm(bert_pieces, last_hidden) as one block-diag
    #      matmul; zero-pad to 128 lanes so the store is a full unmasked vst ----
    o = mm(pieces, x)                                          # (B*P, H)
    out_ref[...] = jnp.concatenate(
        [o, jnp.zeros((B * P, OUT_C - H), f32)], axis=-1)


# --------------------------- model assembly (glue) ---------------------------
def adapter_pgn_bert_forward(params, input_ids, token_type_ids, mask,
                             bert_pieces, lang_emb):
    f32 = jnp.float32

    # embeddings (gathers are plain-JAX glue; LayerNorm happens in-kernel)
    emb = (params["word_emb"][input_ids]
           + params["pos_emb"][:S][None, :, :]
           + params["tok_emb"][token_type_ids]).astype(f32)    # (B,S,H)

    # block-diagonal attention bias + block-diagonal bert_pieces
    bias = jnp.full((T, T), NEG_BIG, f32)
    pieces_bd = jnp.zeros((B * P, T), f32)
    for b in range(B):
        row = (1.0 - mask[b].astype(f32)) * -10000.0           # (S,)
        bias = bias.at[b * S:(b + 1) * S, b * S:(b + 1) * S].set(
            jnp.broadcast_to(row[None, :], (S, S)))
        pieces_bd = pieces_bd.at[b * P:(b + 1) * P, b * S:(b + 1) * S].set(
            bert_pieces[b].astype(f32))

    data = jnp.zeros((T, DATA_C), f32)
    data = data.at[:, D_X:D_X + H].set(emb.reshape(T, H))
    data = data.at[:, D_BIAS:D_BIAS + T].set(bias)
    data = data.at[0:B * P, D_PIECES:D_PIECES + T].set(pieces_bd)

    # PGN adapter weight generation (tiny einsums, hoisted out of the kernel)
    def gen_adapter(prefix):
        dw = jnp.einsum("e,leha->lha", lang_emb, params[prefix + "_down_W"])
        db = jnp.einsum("e,lea->la", lang_emb, params[prefix + "_down_b"])
        uw = jnp.einsum("e,leah->lah", lang_emb, params[prefix + "_up_W"])
        ub = jnp.einsum("e,leh->lh", lang_emb, params[prefix + "_up_b"])
        return dw, db, uw, ub

    a_dw, a_db, a_uw, a_ub = gen_adapter("attn")   # adapters[i][1] -> attention.output
    o_dw, o_db, o_uw, o_ub = gen_adapter("out")    # adapters[i][0] -> layer.output

    # one lane-dense bf16 weight slab (all matmul weights, all layers)
    pages = []
    for l in range(LAYERS):
        pg = jnp.zeros((PAGE_R, PAGE_C), f32)
        wqkv = jnp.concatenate(
            [params["Wq"][l], params["Wk"][l], params["Wv"][l]], axis=1)
        pg = pg.at[0:H, 0:3 * H].set(wqkv)
        pg = pg.at[0:H, C_AO:C_AO + H].set(params["Wao"][l])
        pg = pg.at[0:H, C_WI:C_WI + INTER].set(params["Wi"][l])
        pg = pg.at[0:H, C_ADW:C_ADW + ADAPTER].set(a_dw[l])
        pg = pg.at[0:H, C_ODW:C_ODW + ADAPTER].set(o_dw[l])
        pg = pg.at[R_WO:R_WO + INTER, 0:H].set(params["Wo"][l])
        pg = pg.at[R_AUW:R_AUW + ADAPTER, 0:H].set(a_uw[l])
        pg = pg.at[R_OUW:R_OUW + ADAPTER, 0:H].set(o_uw[l])
        pages.append(pg)
    wmat = jnp.concatenate(pages, axis=0).astype(jnp.bfloat16)  # (L*128, 256)

    # one f32 bias / LayerNorm vector slab (one vector per row)
    vec = jnp.zeros((VEC_R, 128), f32)
    vec = vec.at[V_EMB_G, 0:H].set(params["emb_ln_g"])
    vec = vec.at[V_EMB_B, 0:H].set(params["emb_ln_b"])
    for l in range(LAYERS):
        r = 2 + VPL * l
        vec = vec.at[r + V_BQKV, 0:3 * H].set(
            jnp.concatenate([params["bq"][l], params["bk"][l], params["bv"][l]]))
        vec = vec.at[r + V_BAO, 0:H].set(params["bao"][l])
        vec = vec.at[r + V_LN1G, 0:H].set(params["ln1_g"][l])
        vec = vec.at[r + V_LN1B, 0:H].set(params["ln1_b"][l])
        vec = vec.at[r + V_BI, 0:INTER].set(params["bi"][l])
        vec = vec.at[r + V_BO, 0:H].set(params["bo"][l])
        vec = vec.at[r + V_LN2G, 0:H].set(params["ln2_g"][l])
        vec = vec.at[r + V_LN2B, 0:H].set(params["ln2_b"][l])
        vec = vec.at[r + V_ADB, 0:ADAPTER].set(a_db[l])
        vec = vec.at[r + V_AUB, 0:H].set(a_ub[l])
        vec = vec.at[r + V_ODB, 0:ADAPTER].set(o_db[l])
        vec = vec.at[r + V_OUB, 0:H].set(o_ub[l])

    # Gridless single invocation: 3 operands (< 200 KB total) fully resident
    # in VMEM, no pipeline, lane-dense (unmasked) output store.
    out128 = pl.pallas_call(
        _fused_bert_kernel,
        out_shape=jax.ShapeDtypeStruct((B * P, OUT_C), f32),
    )(data, wmat, vec)

    return out128[:, :H].reshape(B, P, H)


# --------------------------- deterministic params -----------------------------
def init_params(key):
    keys = iter(jax.random.split(key, 64))

    def nrm(shape, std=0.02):
        return (std * jax.random.normal(next(keys), shape)).astype(jnp.float32)

    def zeros(shape):
        return jnp.zeros(shape, jnp.float32)

    def ones(shape):
        return jnp.ones(shape, jnp.float32)

    return {
        "word_emb": nrm((VOCAB, H)),
        "pos_emb": nrm((MAX_POS, H)),
        "tok_emb": nrm((2, H)),
        "emb_ln_g": ones((H,)),
        "emb_ln_b": zeros((H,)),
        # per-layer stacks; weights stored (in,out) so x @ W + b == F.linear(x, W.T, b)
        "Wq": nrm((LAYERS, H, H)), "bq": zeros((LAYERS, H)),
        "Wk": nrm((LAYERS, H, H)), "bk": zeros((LAYERS, H)),
        "Wv": nrm((LAYERS, H, H)), "bv": zeros((LAYERS, H)),
        "Wao": nrm((LAYERS, H, H)), "bao": zeros((LAYERS, H)),
        "ln1_g": ones((LAYERS, H)), "ln1_b": zeros((LAYERS, H)),
        "Wi": nrm((LAYERS, H, INTER)), "bi": zeros((LAYERS, INTER)),
        "Wo": nrm((LAYERS, INTER, H)), "bo": zeros((LAYERS, H)),
        "ln2_g": ones((LAYERS, H)), "ln2_b": zeros((LAYERS, H)),
        # AdapterWithParameterGen.init_weights: W ~ N(0, 1e-4), biases zero
        "attn_down_W": nrm((LAYERS, LANG_EMB, H, ADAPTER), std=1e-4),
        "attn_down_b": zeros((LAYERS, LANG_EMB, ADAPTER)),
        "attn_up_W": nrm((LAYERS, LANG_EMB, ADAPTER, H), std=1e-4),
        "attn_up_b": zeros((LAYERS, LANG_EMB, H)),
        "out_down_W": nrm((LAYERS, LANG_EMB, H, ADAPTER), std=1e-4),
        "out_down_b": zeros((LAYERS, LANG_EMB, ADAPTER)),
        "out_up_W": nrm((LAYERS, LANG_EMB, ADAPTER, H), std=1e-4),
        "out_up_b": zeros((LAYERS, LANG_EMB, H)),
    }


# ------------------------------------ main ------------------------------------
if __name__ == "__main__":
    root = jax.random.PRNGKey(0)
    k_param, k_ids, k_pieces, k_lang = jax.random.split(root, 4)

    params = init_params(k_param)

    input_ids = jax.random.randint(k_ids, (B, S), 0, VOCAB, dtype=jnp.int32)
    token_type_ids = jnp.zeros((B, S), dtype=jnp.int32)
    mask = jnp.ones((B, S), dtype=jnp.float32)
    bert_pieces = jax.nn.softmax(
        jax.random.normal(k_pieces, (B, P, S), dtype=jnp.float32), axis=-1)
    lang_emb = jax.random.normal(k_lang, (LANG_EMB,), dtype=jnp.float32)

    fwd = jax.jit(adapter_pgn_bert_forward)
    out = fwd(params, input_ids, token_type_ids, mask, bert_pieces, lang_emb)
    out = jax.block_until_ready(out)

    assert out.shape == (B, P, H) and out.dtype == jnp.float32
    assert bool(jnp.all(jnp.isfinite(out)))
    print("KERNEL_OK")
</pallas_src>

<mosaic_0001>
module attributes {stable_mosaic.version = 11 : i64} {
  func.func @_fused_bert_kernel(%arg0: memref<16x128xf32, #tpu.memory_space<vmem>>, %arg1: memref<256x256xbf16, #tpu.memory_space<vmem>>, %arg2: memref<32x128xf32, #tpu.memory_space<vmem>>, %arg3: memref<8x128xf32, #tpu.memory_space<vmem>>) attributes {dimension_semantics = [], scalar_prefetch = 0 : i64, scratch_operands = 0 : i64, tpu.core_type = #tpu.core_type<tc>} {
    %c0 = arith.constant 0 : index
    %c0_0 = arith.constant 0 : index
    %0 = vector.load %arg0[%c0, %c0_0] : memref<16x128xf32, #tpu.memory_space<vmem>>, vector<16x32xf32>
    %c0_1 = arith.constant 0 : index
    %c0_2 = arith.constant 0 : index
    %1 = vector.load %arg2[%c0_1, %c0_2] : memref<32x128xf32, #tpu.memory_space<vmem>>, vector<1x32xf32>
    %c1 = arith.constant 1 : index
    %c0_3 = arith.constant 0 : index
    %2 = vector.load %arg2[%c1, %c0_3] : memref<32x128xf32, #tpu.memory_space<vmem>>, vector<1x32xf32>
    %cst = arith.constant dense<0.000000e+00> : vector<16xf32>
    %3 = vector.multi_reduction <add>, %0, %cst [1] : vector<16x32xf32> to vector<16xf32>
    %4 = vector.shape_cast %3 : vector<16xf32> to vector<16x1xf32>
    %cst_4 = arith.constant 3.200000e+01 : f32
    %5 = vector.broadcast %cst_4 : f32 to vector<16x1xf32>
    %6 = arith.divf %4, %5 : vector<16x1xf32>
    %7 = vector.broadcast %6 : vector<16x1xf32> to vector<16x32xf32>
    %8 = arith.subf %0, %7 : vector<16x32xf32>
    %9 = arith.mulf %8, %8 : vector<16x32xf32>
    %cst_5 = arith.constant dense<0.000000e+00> : vector<16xf32>
    %10 = vector.multi_reduction <add>, %9, %cst_5 [1] : vector<16x32xf32> to vector<16xf32>
    %11 = vector.shape_cast %10 : vector<16xf32> to vector<16x1xf32>
    %cst_6 = arith.constant 3.200000e+01 : f32
    %12 = vector.broadcast %cst_6 : f32 to vector<16x1xf32>
    %13 = arith.divf %11, %12 : vector<16x1xf32>
    %14 = vector.broadcast %6 : vector<16x1xf32> to vector<16x32xf32>
    %15 = arith.subf %0, %14 : vector<16x32xf32>
    %cst_7 = arith.constant 9.99999996E-13 : f32
    %16 = vector.broadcast %cst_7 : f32 to vector<16x1xf32>
    %17 = arith.addf %13, %16 : vector<16x1xf32>
    %18 = math.rsqrt %17 : vector<16x1xf32>
    %19 = vector.broadcast %18 : vector<16x1xf32> to vector<16x32xf32>
    %20 = arith.mulf %15, %19 : vector<16x32xf32>
    %21 = vector.broadcast %1 : vector<1x32xf32> to vector<16x32xf32>
    %22 = arith.mulf %20, %21 : vector<16x32xf32>
    %23 = vector.broadcast %2 : vector<1x32xf32> to vector<16x32xf32>
    %24 = arith.addf %22, %23 : vector<16x32xf32>
    %c0_8 = arith.constant 0 : index
    %c32 = arith.constant 32 : index
    %25 = vector.load %arg0[%c0_8, %c32] : memref<16x128xf32, #tpu.memory_space<vmem>>, vector<16x16xf32>
    %c0_9 = arith.constant 0 : index
    %c48 = arith.constant 48 : index
    %26 = vector.load %arg0[%c0_9, %c48] : memref<16x128xf32, #tpu.memory_space<vmem>>, vector<8x16xf32>
    %c0_10 = arith.constant 0 : index
    %c0_11 = arith.constant 0 : index
    %27 = vector.load %arg1[%c0_10, %c0_11] : memref<256x256xbf16, #tpu.memory_space<vmem>>, vector<32x96xbf16>
    %28 = arith.truncf %24 : vector<16x32xf32> to vector<16x32xbf16>
    %cst_12 = arith.constant dense<0.000000e+00> : vector<16x96xf32>
    %29 = tpu.matmul %28, %27, %cst_12 {dimension_numbers = #tpu.dot_dimension_numbers<[1], [0], [0], [1], [0, 0, 1, 1], [], []>} : vector<16x32xbf16>, vector<32x96xbf16>, vector<16x96xf32> -> vector<16x96xf32>
    %c2 = arith.constant 2 : index
    %c0_13 = arith.constant 0 : index
    %30 = vector.load %arg2[%c2, %c0_13] : memref<32x128xf32, #tpu.memory_space<vmem>>, vector<1x96xf32>
    %31 = vector.broadcast %30 : vector<1x96xf32> to vector<16x96xf32>
    %32 = arith.addf %29, %31 : vector<16x96xf32>
    %33 = vector.extract_strided_slice %32 {offsets = [0, 0], sizes = [16, 16], strides = [1, 1]} : vector<16x96xf32> to vector<16x16xf32>
    %34 = vector.extract_strided_slice %32 {offsets = [0, 32], sizes = [16, 16], strides = [1, 1]} : vector<16x96xf32> to vector<16x16xf32>
    %35 = vector.extract_strided_slice %32 {offsets = [0, 64], sizes = [16, 16], strides = [1, 1]} : vector<16x96xf32> to vector<16x16xf32>
    %36 = arith.truncf %33 : vector<16x16xf32> to vector<16x16xbf16>
    %37 = arith.truncf %34 : vector<16x16xf32> to vector<16x16xbf16>
    %cst_14 = arith.constant dense<0.000000e+00> : vector<16x16xf32>
    %38 = tpu.matmul %36, %37, %cst_14 {dimension_numbers = #tpu.dot_dimension_numbers<[1], [1], [0], [0], [0, 0, 1, 0], [], []>} : vector<16x16xbf16>, vector<16x16xbf16>, vector<16x16xf32> -> vector<16x16xf32>
    %cst_15 = arith.constant 2.500000e-01 : f32
    %39 = vector.broadcast %cst_15 : f32 to vector<16x16xf32>
    %40 = arith.mulf %38, %39 : vector<16x16xf32>
    %41 = arith.addf %40, %25 : vector<16x16xf32>
    %cst_16 = arith.constant dense<0xFF800000> : vector<16xf32>
    %42 = vector.multi_reduction <maximumf>, %41, %cst_16 [1] : vector<16x16xf32> to vector<16xf32>
    %43 = vector.shape_cast %42 : vector<16xf32> to vector<16x1xf32>
    %44 = vector.broadcast %43 : vector<16x1xf32> to vector<16x16xf32>
    %45 = arith.subf %41, %44 : vector<16x16xf32>
    %46 = math.exp %45 : vector<16x16xf32>
    %cst_17 = arith.constant dense<0.000000e+00> : vector<16xf32>
    %47 = vector.multi_reduction <add>, %46, %cst_17 [1] : vector<16x16xf32> to vector<16xf32>
    %48 = vector.shape_cast %47 : vector<16xf32> to vector<16x1xf32>
    %49 = tpu.reciprocal %48 {approx = true} : vector<16x1xf32> -> vector<16x1xf32>
    %50 = vector.broadcast %49 : vector<16x1xf32> to vector<16x16xf32>
    %51 = arith.mulf %46, %50 : vector<16x16xf32>
    %52 = arith.truncf %51 : vector<16x16xf32> to vector<16x16xbf16>
    %53 = arith.truncf %35 : vector<16x16xf32> to vector<16x16xbf16>
    %cst_18 = arith.constant dense<0.000000e+00> : vector<16x16xf32>
    %54 = tpu.matmul %52, %53, %cst_18 {dimension_numbers = #tpu.dot_dimension_numbers<[1], [0], [0], [1], [0, 0, 1, 1], [], []>} : vector<16x16xbf16>, vector<16x16xbf16>, vector<16x16xf32> -> vector<16x16xf32>
    %55 = vector.extract_strided_slice %32 {offsets = [0, 16], sizes = [16, 16], strides = [1, 1]} : vector<16x96xf32> to vector<16x16xf32>
    %56 = vector.extract_strided_slice %32 {offsets = [0, 48], sizes = [16, 16], strides = [1, 1]} : vector<16x96xf32> to vector<16x16xf32>
    %57 = vector.extract_strided_slice %32 {offsets = [0, 80], sizes = [16, 16], strides = [1, 1]} : vector<16x96xf32> to vector<16x16xf32>
    %58 = arith.truncf %55 : vector<16x16xf32> to vector<16x16xbf16>
    %59 = arith.truncf %56 : vector<16x16xf32> to vector<16x16xbf16>
    %cst_19 = arith.constant dense<0.000000e+00> : vector<16x16xf32>
    %60 = tpu.matmul %58, %59, %cst_19 {dimension_numbers = #tpu.dot_dimension_numbers<[1], [1], [0], [0], [0, 0, 1, 0], [], []>} : vector<16x16xbf16>, vector<16x16xbf16>, vector<16x16xf32> -> vector<16x16xf32>
    %cst_20 = arith.constant 2.500000e-01 : f32
    %61 = vector.broadcast %cst_20 : f32 to vector<16x16xf32>
    %62 = arith.mulf %60, %61 : vector<16x16xf32>
    %63 = arith.addf %62, %25 : vector<16x16xf32>
    %cst_21 = arith.constant dense<0xFF800000> : vector<16xf32>
    %64 = vector.multi_reduction <maximumf>, %63, %cst_21 [1] : vector<16x16xf32> to vector<16xf32>
    %65 = vector.shape_cast %64 : vector<16xf32> to vector<16x1xf32>
    %66 = vector.broadcast %65 : vector<16x1xf32> to vector<16x16xf32>
    %67 = arith.subf %63, %66 : vector<16x16xf32>
    %68 = math.exp %67 : vector<16x16xf32>
    %cst_22 = arith.constant dense<0.000000e+00> : vector<16xf32>
    %69 = vector.multi_reduction <add>, %68, %cst_22 [1] : vector<16x16xf32> to vector<16xf32>
    %70 = vector.shape_cast %69 : vector<16xf32> to vector<16x1xf32>
    %71 = tpu.reciprocal %70 {approx = true} : vector<16x1xf32> -> vector<16x1xf32>
    %72 = vector.broadcast %71 : vector<16x1xf32> to vector<16x16xf32>
    %73 = arith.mulf %68, %72 : vector<16x16xf32>
    %74 = arith.truncf %73 : vector<16x16xf32> to vector<16x16xbf16>
    %75 = arith.truncf %57 : vector<16x16xf32> to vector<16x16xbf16>
    %cst_23 = arith.constant dense<0.000000e+00> : vector<16x16xf32>
    %76 = tpu.matmul %74, %75, %cst_23 {dimension_numbers = #tpu.dot_dimension_numbers<[1], [0], [0], [1], [0, 0, 1, 1], [], []>} : vector<16x16xbf16>, vector<16x16xbf16>, vector<16x16xf32> -> vector<16x16xf32>
    %77 = tpu.concatenate %54, %76 in 1 : vector<16x16xf32>, vector<16x16xf32> -> vector<16x32xf32>
    %c0_24 = arith.constant 0 : index
    %c96 = arith.constant 96 : index
    %78 = vector.load %arg1[%c0_24, %c96] : memref<256x256xbf16, #tpu.memory_space<vmem>>, vector<32x32xbf16>
    %79 = arith.truncf %77 : vector<16x32xf32> to vector<16x32xbf16>
    %cst_25 = arith.constant dense<0.000000e+00> : vector<16x32xf32>
    %80 = tpu.matmul %79, %78, %cst_25 {dimension_numbers = #tpu.dot_dimension_numbers<[1], [0], [0], [1], [0, 0, 1, 1], [], []>} : vector<16x32xbf16>, vector<32x32xbf16>, vector<16x32xf32> -> vector<16x32xf32>
    %c3 = arith.constant 3 : index
    %c0_26 = arith.constant 0 : index
    %81 = vector.load %arg2[%c3, %c0_26] : memref<32x128xf32, #tpu.memory_space<vmem>>, vector<1x32xf32>
    %82 = vector.broadcast %81 : vector<1x32xf32> to vector<16x32xf32>
    %83 = arith.addf %80, %82 : vector<16x32xf32>
    %c0_27 = arith.constant 0 : index
    %c192 = arith.constant 192 : index
    %84 = vector.load %arg1[%c0_27, %c192] : memref<256x256xbf16, #tpu.memory_space<vmem>>, vector<32x16xbf16>
    %85 = arith.truncf %83 : vector<16x32xf32> to vector<16x32xbf16>
    %cst_28 = arith.constant dense<0.000000e+00> : vector<16x16xf32>
    %86 = tpu.matmul %85, %84, %cst_28 {dimension_numbers = #tpu.dot_dimension_numbers<[1], [0], [0], [1], [0, 0, 1, 1], [], []>} : vector<16x32xbf16>, vector<32x16xbf16>, vector<16x16xf32> -> vector<16x16xf32>
    %c10 = arith.constant 10 : index
    %c0_29 = arith.constant 0 : index
    %87 = vector.load %arg2[%c10, %c0_29] : memref<32x128xf32, #tpu.memory_space<vmem>>, vector<1x16xf32>
    %88 = vector.broadcast %87 : vector<1x16xf32> to vector<16x16xf32>
    %89 = arith.addf %86, %88 : vector<16x16xf32>
    %cst_30 = arith.constant 5.000000e-01 : f32
    %90 = vector.broadcast %cst_30 : f32 to vector<16x16xf32>
    %91 = arith.mulf %90, %89 : vector<16x16xf32>
    %cst_31 = arith.constant 0.707106769 : f32
    %92 = vector.broadcast %cst_31 : f32 to vector<16x16xf32>
    %93 = arith.mulf %89, %92 : vector<16x16xf32>
    %94 = math.erf %93 : vector<16x16xf32>
    %cst_32 = arith.constant 1.000000e+00 : f32
    %95 = vector.broadcast %cst_32 : f32 to vector<16x16xf32>
    %96 = arith.addf %95, %94 : vector<16x16xf32>
    %97 = arith.mulf %91, %96 : vector<16x16xf32>
    %c96_33 = arith.constant 96 : index
    %c0_34 = arith.constant 0 : index
    %98 = vector.load %arg1[%c96_33, %c0_34] : memref<256x256xbf16, #tpu.memory_space<vmem>>, vector<16x32xbf16>
    %99 = arith.truncf %97 : vector<16x16xf32> to vector<16x16xbf16>
    %cst_35 = arith.constant dense<0.000000e+00> : vector<16x32xf32>
    %100 = tpu.matmul %99, %98, %cst_35 {dimension_numbers = #tpu.dot_dimension_numbers<[1], [0], [0], [1], [0, 0, 1, 1], [], []>} : vector<16x16xbf16>, vector<16x32xbf16>, vector<16x32xf32> -> vector<16x32xf32>
    %101 = arith.addf %83, %100 : vector<16x32xf32>
    %c11 = arith.constant 11 : index
    %c0_36 = arith.constant 0 : index
    %102 = vector.load %arg2[%c11, %c0_36] : memref<32x128xf32, #tpu.memory_space<vmem>>, vector<1x32xf32>
    %103 = vector.broadcast %102 : vector<1x32xf32> to vector<16x32xf32>
    %104 = arith.addf %101, %103 : vector<16x32xf32>
    %105 = arith.addf %104, %24 : vector<16x32xf32>
    %c4 = arith.constant 4 : index
    %c0_37 = arith.constant 0 : index
    %106 = vector.load %arg2[%c4, %c0_37] : memref<32x128xf32, #tpu.memory_space<vmem>>, vector<1x32xf32>
    %c5 = arith.constant 5 : index
    %c0_38 = arith.constant 0 : index
    %107 = vector.load %arg2[%c5, %c0_38] : memref<32x128xf32, #tpu.memory_space<vmem>>, vector<1x32xf32>
    %cst_39 = arith.constant dense<0.000000e+00> : vector<16xf32>
    %108 = vector.multi_reduction <add>, %105, %cst_39 [1] : vector<16x32xf32> to vector<16xf32>
    %109 = vector.shape_cast %108 : vector<16xf32> to vector<16x1xf32>
    %cst_40 = arith.constant 3.200000e+01 : f32
    %110 = vector.broadcast %cst_40 : f32 to vector<16x1xf32>
    %111 = arith.divf %109, %110 : vector<16x1xf32>
    %112 = vector.broadcast %111 : vector<16x1xf32> to vector<16x32xf32>
    %113 = arith.subf %105, %112 : vector<16x32xf32>
    %114 = arith.mulf %113, %113 : vector<16x32xf32>
    %cst_41 = arith.constant dense<0.000000e+00> : vector<16xf32>
    %115 = vector.multi_reduction <add>, %114, %cst_41 [1] : vector<16x32xf32> to vector<16xf32>
    %116 = vector.shape_cast %115 : vector<16xf32> to vector<16x1xf32>
    %cst_42 = arith.constant 3.200000e+01 : f32
    %117 = vector.broadcast %cst_42 : f32 to vector<16x1xf32>
    %118 = arith.divf %116, %117 : vector<16x1xf32>
    %119 = vector.broadcast %111 : vector<16x1xf32> to vector<16x32xf32>
    %120 = arith.subf %105, %119 : vector<16x32xf32>
    %cst_43 = arith.constant 9.99999996E-13 : f32
    %121 = vector.broadcast %cst_43 : f32 to vector<16x1xf32>
    %122 = arith.addf %118, %121 : vector<16x1xf32>
    %123 = math.rsqrt %122 : vector<16x1xf32>
    %124 = vector.broadcast %123 : vector<16x1xf32> to vector<16x32xf32>
    %125 = arith.mulf %120, %124 : vector<16x32xf32>
    %126 = vector.broadcast %106 : vector<1x32xf32> to vector<16x32xf32>
    %127 = arith.mulf %125, %126 : vector<16x32xf32>
    %128 = vector.broadcast %107 : vector<1x32xf32> to vector<16x32xf32>
    %129 = arith.addf %127, %128 : vector<16x32xf32>
    %c0_44 = arith.constant 0 : index
    %c128 = arith.constant 128 : index
    %130 = vector.load %arg1[%c0_44, %c128] : memref<256x256xbf16, #tpu.memory_space<vmem>>, vector<32x64xbf16>
    %131 = arith.truncf %129 : vector<16x32xf32> to vector<16x32xbf16>
    %cst_45 = arith.constant dense<0.000000e+00> : vector<16x64xf32>
    %132 = tpu.matmul %131, %130, %cst_45 {dimension_numbers = #tpu.dot_dimension_numbers<[1], [0], [0], [1], [0, 0, 1, 1], [], []>} : vector<16x32xbf16>, vector<32x64xbf16>, vector<16x64xf32> -> vector<16x64xf32>
    %c6 = arith.constant 6 : index
    %c0_46 = arith.constant 0 : index
    %133 = vector.load %arg2[%c6, %c0_46] : memref<32x128xf32, #tpu.memory_space<vmem>>, vector<1x64xf32>
    %134 = vector.broadcast %133 : vector<1x64xf32> to vector<16x64xf32>
    %135 = arith.addf %132, %134 : vector<16x64xf32>
    %cst_47 = arith.constant 5.000000e-01 : f32
    %136 = vector.broadcast %cst_47 : f32 to vector<16x64xf32>
    %137 = arith.mulf %136, %135 : vector<16x64xf32>
    %cst_48 = arith.constant 0.707106769 : f32
    %138 = vector.broadcast %cst_48 : f32 to vector<16x64xf32>
    %139 = arith.mulf %135, %138 : vector<16x64xf32>
    %140 = math.erf %139 : vector<16x64xf32>
    %cst_49 = arith.constant 1.000000e+00 : f32
    %141 = vector.broadcast %cst_49 : f32 to vector<16x64xf32>
    %142 = arith.addf %141, %140 : vector<16x64xf32>
    %143 = arith.mulf %137, %142 : vector<16x64xf32>
    %c32_50 = arith.constant 32 : index
    %c0_51 = arith.constant 0 : index
    %144 = vector.load %arg1[%c32_50, %c0_51] : memref<256x256xbf16, #tpu.memory_space<vmem>>, vector<64x32xbf16>
    %145 = arith.truncf %143 : vector<16x64xf32> to vector<16x64xbf16>
    %cst_52 = arith.constant dense<0.000000e+00> : vector<16x32xf32>
    %146 = tpu.matmul %145, %144, %cst_52 {dimension_numbers = #tpu.dot_dimension_numbers<[1], [0], [0], [1], [0, 0, 1, 1], [], []>} : vector<16x64xbf16>, vector<64x32xbf16>, vector<16x32xf32> -> vector<16x32xf32>
    %c7 = arith.constant 7 : index
    %c0_53 = arith.constant 0 : index
    %147 = vector.load %arg2[%c7, %c0_53] : memref<32x128xf32, #tpu.memory_space<vmem>>, vector<1x32xf32>
    %148 = vector.broadcast %147 : vector<1x32xf32> to vector<16x32xf32>
    %149 = arith.addf %146, %148 : vector<16x32xf32>
    %c0_54 = arith.constant 0 : index
    %c208 = arith.constant 208 : index
    %150 = vector.load %arg1[%c0_54, %c208] : memref<256x256xbf16, #tpu.memory_space<vmem>>, vector<32x16xbf16>
    %151 = arith.truncf %149 : vector<16x32xf32> to vector<16x32xbf16>
    %cst_55 = arith.constant dense<0.000000e+00> : vector<16x16xf32>
    %152 = tpu.matmul %151, %150, %cst_55 {dimension_numbers = #tpu.dot_dimension_numbers<[1], [0], [0], [1], [0, 0, 1, 1], [], []>} : vector<16x32xbf16>, vector<32x16xbf16>, vector<16x16xf32> -> vector<16x16xf32>
    %c12 = arith.constant 12 : index
    %c0_56 = arith.constant 0 : index
    %153 = vector.load %arg2[%c12, %c0_56] : memref<32x128xf32, #tpu.memory_space<vmem>>, vector<1x16xf32>
    %154 = vector.broadcast %153 : vector<1x16xf32> to vector<16x16xf32>
    %155 = arith.addf %152, %154 : vector<16x16xf32>
    %cst_57 = arith.constant 5.000000e-01 : f32
    %156 = vector.broadcast %cst_57 : f32 to vector<16x16xf32>
    %157 = arith.mulf %156, %155 : vector<16x16xf32>
    %cst_58 = arith.constant 0.707106769 : f32
    %158 = vector.broadcast %cst_58 : f32 to vector<16x16xf32>
    %159 = arith.mulf %155, %158 : vector<16x16xf32>
    %160 = math.erf %159 : vector<16x16xf32>
    %cst_59 = arith.constant 1.000000e+00 : f32
    %161 = vector.broadcast %cst_59 : f32 to vector<16x16xf32>
    %162 = arith.addf %161, %160 : vector<16x16xf32>
    %163 = arith.mulf %157, %162 : vector<16x16xf32>
    %c112 = arith.constant 112 : index
    %c0_60 = arith.constant 0 : index
    %164 = vector.load %arg1[%c112, %c0_60] : memref<256x256xbf16, #tpu.memory_space<vmem>>, vector<16x32xbf16>
    %165 = arith.truncf %163 : vector<16x16xf32> to vector<16x16xbf16>
    %cst_61 = arith.constant dense<0.000000e+00> : vector<16x32xf32>
    %166 = tpu.matmul %165, %164, %cst_61 {dimension_numbers = #tpu.dot_dimension_numbers<[1], [0], [0], [1], [0, 0, 1, 1], [], []>} : vector<16x16xbf16>, vector<16x32xbf16>, vector<16x32xf32> -> vector<16x32xf32>
    %167 = arith.addf %149, %166 : vector<16x32xf32>
    %c13 = arith.constant 13 : index
    %c0_62 = arith.constant 0 : index
    %168 = vector.load %arg2[%c13, %c0_62] : memref<32x128xf32, #tpu.memory_space<vmem>>, vector<1x32xf32>
    %169 = vector.broadcast %168 : vector<1x32xf32> to vector<16x32xf32>
    %170 = arith.addf %167, %169 : vector<16x32xf32>
    %171 = arith.addf %170, %129 : vector<16x32xf32>
    %c8 = arith.constant 8 : index
    %c0_63 = arith.constant 0 : index
    %172 = vector.load %arg2[%c8, %c0_63] : memref<32x128xf32, #tpu.memory_space<vmem>>, vector<1x32xf32>
    %c9 = arith.constant 9 : index
    %c0_64 = arith.constant 0 : index
    %173 = vector.load %arg2[%c9, %c0_64] : memref<32x128xf32, #tpu.memory_space<vmem>>, vector<1x32xf32>
    %cst_65 = arith.constant dense<0.000000e+00> : vector<16xf32>
    %174 = vector.multi_reduction <add>, %171, %cst_65 [1] : vector<16x32xf32> to vector<16xf32>
    %175 = vector.shape_cast %174 : vector<16xf32> to vector<16x1xf32>
    %cst_66 = arith.constant 3.200000e+01 : f32
    %176 = vector.broadcast %cst_66 : f32 to vector<16x1xf32>
    %177 = arith.divf %175, %176 : vector<16x1xf32>
    %178 = vector.broadcast %177 : vector<16x1xf32> to vector<16x32xf32>
    %179 = arith.subf %171, %178 : vector<16x32xf32>
    %180 = arith.mulf %179, %179 : vector<16x32xf32>
    %cst_67 = arith.constant dense<0.000000e+00> : vector<16xf32>
    %181 = vector.multi_reduction <add>, %180, %cst_67 [1] : vector<16x32xf32> to vector<16xf32>
    %182 = vector.shape_cast %181 : vector<16xf32> to vector<16x1xf32>
    %cst_68 = arith.constant 3.200000e+01 : f32
    %183 = vector.broadcast %cst_68 : f32 to vector<16x1xf32>
    %184 = arith.divf %182, %183 : vector<16x1xf32>
    %185 = vector.broadcast %177 : vector<16x1xf32> to vector<16x32xf32>
    %186 = arith.subf %171, %185 : vector<16x32xf32>
    %cst_69 = arith.constant 9.99999996E-13 : f32
    %187 = vector.broadcast %cst_69 : f32 to vector<16x1xf32>
    %188 = arith.addf %184, %187 : vector<16x1xf32>
    %189 = math.rsqrt %188 : vector<16x1xf32>
    %190 = vector.broadcast %189 : vector<16x1xf32> to vector<16x32xf32>
    %191 = arith.mulf %186, %190 : vector<16x32xf32>
    %192 = vector.broadcast %172 : vector<1x32xf32> to vector<16x32xf32>
    %193 = arith.mulf %191, %192 : vector<16x32xf32>
    %194 = vector.broadcast %173 : vector<1x32xf32> to vector<16x32xf32>
    %195 = arith.addf %193, %194 : vector<16x32xf32>
    %c128_70 = arith.constant 128 : index
    %c0_71 = arith.constant 0 : index
    %196 = vector.load %arg1[%c128_70, %c0_71] : memref<256x256xbf16, #tpu.memory_space<vmem>>, vector<32x96xbf16>
    %197 = arith.truncf %195 : vector<16x32xf32> to vector<16x32xbf16>
    %cst_72 = arith.constant dense<0.000000e+00> : vector<16x96xf32>
    %198 = tpu.matmul %197, %196, %cst_72 {dimension_numbers = #tpu.dot_dimension_numbers<[1], [0], [0], [1], [0, 0, 1, 1], [], []>} : vector<16x32xbf16>, vector<32x96xbf16>, vector<16x96xf32> -> vector<16x96xf32>
    %c14 = arith.constant 14 : index
    %c0_73 = arith.constant 0 : index
    %199 = vector.load %arg2[%c14, %c0_73] : memref<32x128xf32, #tpu.memory_space<vmem>>, vector<1x96xf32>
    %200 = vector.broadcast %199 : vector<1x96xf32> to vector<16x96xf32>
    %201 = arith.addf %198, %200 : vector<16x96xf32>
    %202 = vector.extract_strided_slice %201 {offsets = [0, 0], sizes = [16, 16], strides = [1, 1]} : vector<16x96xf32> to vector<16x16xf32>
    %203 = vector.extract_strided_slice %201 {offsets = [0, 32], sizes = [16, 16], strides = [1, 1]} : vector<16x96xf32> to vector<16x16xf32>
    %204 = vector.extract_strided_slice %201 {offsets = [0, 64], sizes = [16, 16], strides = [1, 1]} : vector<16x96xf32> to vector<16x16xf32>
    %205 = arith.truncf %202 : vector<16x16xf32> to vector<16x16xbf16>
    %206 = arith.truncf %203 : vector<16x16xf32> to vector<16x16xbf16>
    %cst_74 = arith.constant dense<0.000000e+00> : vector<16x16xf32>
    %207 = tpu.matmul %205, %206, %cst_74 {dimension_numbers = #tpu.dot_dimension_numbers<[1], [1], [0], [0], [0, 0, 1, 0], [], []>} : vector<16x16xbf16>, vector<16x16xbf16>, vector<16x16xf32> -> vector<16x16xf32>
    %cst_75 = arith.constant 2.500000e-01 : f32
    %208 = vector.broadcast %cst_75 : f32 to vector<16x16xf32>
    %209 = arith.mulf %207, %208 : vector<16x16xf32>
    %210 = arith.addf %209, %25 : vector<16x16xf32>
    %cst_76 = arith.constant dense<0xFF800000> : vector<16xf32>
    %211 = vector.multi_reduction <maximumf>, %210, %cst_76 [1] : vector<16x16xf32> to vector<16xf32>
    %212 = vector.shape_cast %211 : vector<16xf32> to vector<16x1xf32>
    %213 = vector.broadcast %212 : vector<16x1xf32> to vector<16x16xf32>
    %214 = arith.subf %210, %213 : vector<16x16xf32>
    %215 = math.exp %214 : vector<16x16xf32>
    %cst_77 = arith.constant dense<0.000000e+00> : vector<16xf32>
    %216 = vector.multi_reduction <add>, %215, %cst_77 [1] : vector<16x16xf32> to vector<16xf32>
    %217 = vector.shape_cast %216 : vector<16xf32> to vector<16x1xf32>
    %218 = tpu.reciprocal %217 {approx = true} : vector<16x1xf32> -> vector<16x1xf32>
    %219 = vector.broadcast %218 : vector<16x1xf32> to vector<16x16xf32>
    %220 = arith.mulf %215, %219 : vector<16x16xf32>
    %221 = arith.truncf %220 : vector<16x16xf32> to vector<16x16xbf16>
    %222 = arith.truncf %204 : vector<16x16xf32> to vector<16x16xbf16>
    %cst_78 = arith.constant dense<0.000000e+00> : vector<16x16xf32>
    %223 = tpu.matmul %221, %222, %cst_78 {dimension_numbers = #tpu.dot_dimension_numbers<[1], [0], [0], [1], [0, 0, 1, 1], [], []>} : vector<16x16xbf16>, vector<16x16xbf16>, vector<16x16xf32> -> vector<16x16xf32>
    %224 = vector.extract_strided_slice %201 {offsets = [0, 16], sizes = [16, 16], strides = [1, 1]} : vector<16x96xf32> to vector<16x16xf32>
    %225 = vector.extract_strided_slice %201 {offsets = [0, 48], sizes = [16, 16], strides = [1, 1]} : vector<16x96xf32> to vector<16x16xf32>
    %226 = vector.extract_strided_slice %201 {offsets = [0, 80], sizes = [16, 16], strides = [1, 1]} : vector<16x96xf32> to vector<16x16xf32>
    %227 = arith.truncf %224 : vector<16x16xf32> to vector<16x16xbf16>
    %228 = arith.truncf %225 : vector<16x16xf32> to vector<16x16xbf16>
    %cst_79 = arith.constant dense<0.000000e+00> : vector<16x16xf32>
    %229 = tpu.matmul %227, %228, %cst_79 {dimension_numbers = #tpu.dot_dimension_numbers<[1], [1], [0], [0], [0, 0, 1, 0], [], []>} : vector<16x16xbf16>, vector<16x16xbf16>, vector<16x16xf32> -> vector<16x16xf32>
    %cst_80 = arith.constant 2.500000e-01 : f32
    %230 = vector.broadcast %cst_80 : f32 to vector<16x16xf32>
    %231 = arith.mulf %229, %230 : vector<16x16xf32>
    %232 = arith.addf %231, %25 : vector<16x16xf32>
    %cst_81 = arith.constant dense<0xFF800000> : vector<16xf32>
    %233 = vector.multi_reduction <maximumf>, %232, %cst_81 [1] : vector<16x16xf32> to vector<16xf32>
    %234 = vector.shape_cast %233 : vector<16xf32> to vector<16x1xf32>
    %235 = vector.broadcast %234 : vector<16x1xf32> to vector<16x16xf32>
    %236 = arith.subf %232, %235 : vector<16x16xf32>
    %237 = math.exp %236 : vector<16x16xf32>
    %cst_82 = arith.constant dense<0.000000e+00> : vector<16xf32>
    %238 = vector.multi_reduction <add>, %237, %cst_82 [1] : vector<16x16xf32> to vector<16xf32>
    %239 = vector.shape_cast %238 : vector<16xf32> to vector<16x1xf32>
    %240 = tpu.reciprocal %239 {approx = true} : vector<16x1xf32> -> vector<16x1xf32>
    %241 = vector.broadcast %240 : vector<16x1xf32> to vector<16x16xf32>
    %242 = arith.mulf %237, %241 : vector<16x16xf32>
    %243 = arith.truncf %242 : vector<16x16xf32> to vector<16x16xbf16>
    %244 = arith.truncf %226 : vector<16x16xf32> to vector<16x16xbf16>
    %cst_83 = arith.constant dense<0.000000e+00> : vector<16x16xf32>
    %245 = tpu.matmul %243, %244, %cst_83 {dimension_numbers = #tpu.dot_dimension_numbers<[1], [0], [0], [1], [0, 0, 1, 1], [], []>} : vector<16x16xbf16>, vector<16x16xbf16>, vector<16x16xf32> -> vector<16x16xf32>
    %246 = tpu.concatenate %223, %245 in 1 : vector<16x16xf32>, vector<16x16xf32> -> vector<16x32xf32>
    %c128_84 = arith.constant 128 : index
    %c96_85 = arith.constant 96 : index
    %247 = vector.load %arg1[%c128_84, %c96_85] : memref<256x256xbf16, #tpu.memory_space<vmem>>, vector<32x32xbf16>
    %248 = arith.truncf %246 : vector<16x32xf32> to vector<16x32xbf16>
    %cst_86 = arith.constant dense<0.000000e+00> : vector<16x32xf32>
    %249 = tpu.matmul %248, %247, %cst_86 {dimension_numbers = #tpu.dot_dimension_numbers<[1], [0], [0], [1], [0, 0, 1, 1], [], []>} : vector<16x32xbf16>, vector<32x32xbf16>, vector<16x32xf32> -> vector<16x32xf32>
    %c15 = arith.constant 15 : index
    %c0_87 = arith.constant 0 : index
    %250 = vector.load %arg2[%c15, %c0_87] : memref<32x128xf32, #tpu.memory_space<vmem>>, vector<1x32xf32>
    %251 = vector.broadcast %250 : vector<1x32xf32> to vector<16x32xf32>
    %252 = arith.addf %249, %251 : vector<16x32xf32>
    %c128_88 = arith.constant 128 : index
    %c192_89 = arith.constant 192 : index
    %253 = vector.load %arg1[%c128_88, %c192_89] : memref<256x256xbf16, #tpu.memory_space<vmem>>, vector<32x16xbf16>
    %254 = arith.truncf %252 : vector<16x32xf32> to vector<16x32xbf16>
    %cst_90 = arith.constant dense<0.000000e+00> : vector<16x16xf32>
    %255 = tpu.matmul %254, %253, %cst_90 {dimension_numbers = #tpu.dot_dimension_numbers<[1], [0], [0], [1], [0, 0, 1, 1], [], []>} : vector<16x32xbf16>, vector<32x16xbf16>, vector<16x16xf32> -> vector<16x16xf32>
    %c22 = arith.constant 22 : index
    %c0_91 = arith.constant 0 : index
    %256 = vector.load %arg2[%c22, %c0_91] : memref<32x128xf32, #tpu.memory_space<vmem>>, vector<1x16xf32>
    %257 = vector.broadcast %256 : vector<1x16xf32> to vector<16x16xf32>
    %258 = arith.addf %255, %257 : vector<16x16xf32>
    %cst_92 = arith.constant 5.000000e-01 : f32
    %259 = vector.broadcast %cst_92 : f32 to vector<16x16xf32>
    %260 = arith.mulf %259, %258 : vector<16x16xf32>
    %cst_93 = arith.constant 0.707106769 : f32
    %261 = vector.broadcast %cst_93 : f32 to vector<16x16xf32>
    %262 = arith.mulf %258, %261 : vector<16x16xf32>
    %263 = math.erf %262 : vector<16x16xf32>
    %cst_94 = arith.constant 1.000000e+00 : f32
    %264 = vector.broadcast %cst_94 : f32 to vector<16x16xf32>
    %265 = arith.addf %264, %263 : vector<16x16xf32>
    %266 = arith.mulf %260, %265 : vector<16x16xf32>
    %c224 = arith.constant 224 : index
    %c0_95 = arith.constant 0 : index
    %267 = vector.load %arg1[%c224, %c0_95] : memref<256x256xbf16, #tpu.memory_space<vmem>>, vector<16x32xbf16>
    %268 = arith.truncf %266 : vector<16x16xf32> to vector<16x16xbf16>
    %cst_96 = arith.constant dense<0.000000e+00> : vector<16x32xf32>
    %269 = tpu.matmul %268, %267, %cst_96 {dimension_numbers = #tpu.dot_dimension_numbers<[1], [0], [0], [1], [0, 0, 1, 1], [], []>} : vector<16x16xbf16>, vector<16x32xbf16>, vector<16x32xf32> -> vector<16x32xf32>
    %270 = arith.addf %252, %269 : vector<16x32xf32>
    %c23 = arith.constant 23 : index
    %c0_97 = arith.constant 0 : index
    %271 = vector.load %arg2[%c23, %c0_97] : memref<32x128xf32, #tpu.memory_space<vmem>>, vector<1x32xf32>
    %272 = vector.broadcast %271 : vector<1x32xf32> to vector<16x32xf32>
    %273 = arith.addf %270, %272 : vector<16x32xf32>
    %274 = arith.addf %273, %195 : vector<16x32xf32>
    %c16 = arith.constant 16 : index
    %c0_98 = arith.constant 0 : index
    %275 = vector.load %arg2[%c16, %c0_98] : memref<32x128xf32, #tpu.memory_space<vmem>>, vector<1x32xf32>
    %c17 = arith.constant 17 : index
    %c0_99 = arith.constant 0 : index
    %276 = vector.load %arg2[%c17, %c0_99] : memref<32x128xf32, #tpu.memory_space<vmem>>, vector<1x32xf32>
    %cst_100 = arith.constant dense<0.000000e+00> : vector<16xf32>
    %277 = vector.multi_reduction <add>, %274, %cst_100 [1] : vector<16x32xf32> to vector<16xf32>
    %278 = vector.shape_cast %277 : vector<16xf32> to vector<16x1xf32>
    %cst_101 = arith.constant 3.200000e+01 : f32
    %279 = vector.broadcast %cst_101 : f32 to vector<16x1xf32>
    %280 = arith.divf %278, %279 : vector<16x1xf32>
    %281 = vector.broadcast %280 : vector<16x1xf32> to vector<16x32xf32>
    %282 = arith.subf %274, %281 : vector<16x32xf32>
    %283 = arith.mulf %282, %282 : vector<16x32xf32>
    %cst_102 = arith.constant dense<0.000000e+00> : vector<16xf32>
    %284 = vector.multi_reduction <add>, %283, %cst_102 [1] : vector<16x32xf32> to vector<16xf32>
    %285 = vector.shape_cast %284 : vector<16xf32> to vector<16x1xf32>
    %cst_103 = arith.constant 3.200000e+01 : f32
    %286 = vector.broadcast %cst_103 : f32 to vector<16x1xf32>
    %287 = arith.divf %285, %286 : vector<16x1xf32>
    %288 = vector.broadcast %280 : vector<16x1xf32> to vector<16x32xf32>
    %289 = arith.subf %274, %288 : vector<16x32xf32>
    %cst_104 = arith.constant 9.99999996E-13 : f32
    %290 = vector.broadcast %cst_104 : f32 to vector<16x1xf32>
    %291 = arith.addf %287, %290 : vector<16x1xf32>
    %292 = math.rsqrt %291 : vector<16x1xf32>
    %293 = vector.broadcast %292 : vector<16x1xf32> to vector<16x32xf32>
    %294 = arith.mulf %289, %293 : vector<16x32xf32>
    %295 = vector.broadcast %275 : vector<1x32xf32> to vector<16x32xf32>
    %296 = arith.mulf %294, %295 : vector<16x32xf32>
    %297 = vector.broadcast %276 : vector<1x32xf32> to vector<16x32xf32>
    %298 = arith.addf %296, %297 : vector<16x32xf32>
    %c128_105 = arith.constant 128 : index
    %c128_106 = arith.constant 128 : index
    %299 = vector.load %arg1[%c128_105, %c128_106] : memref<256x256xbf16, #tpu.memory_space<vmem>>, vector<32x64xbf16>
    %300 = arith.truncf %298 : vector<16x32xf32> to vector<16x32xbf16>
    %cst_107 = arith.constant dense<0.000000e+00> : vector<16x64xf32>
    %301 = tpu.matmul %300, %299, %cst_107 {dimension_numbers = #tpu.dot_dimension_numbers<[1], [0], [0], [1], [0, 0, 1, 1], [], []>} : vector<16x32xbf16>, vector<32x64xbf16>, vector<16x64xf32> -> vector<16x64xf32>
    %c18 = arith.constant 18 : index
    %c0_108 = arith.constant 0 : index
    %302 = vector.load %arg2[%c18, %c0_108] : memref<32x128xf32, #tpu.memory_space<vmem>>, vector<1x64xf32>
    %303 = vector.broadcast %302 : vector<1x64xf32> to vector<16x64xf32>
    %304 = arith.addf %301, %303 : vector<16x64xf32>
    %cst_109 = arith.constant 5.000000e-01 : f32
    %305 = vector.broadcast %cst_109 : f32 to vector<16x64xf32>
    %306 = arith.mulf %305, %304 : vector<16x64xf32>
    %cst_110 = arith.constant 0.707106769 : f32
    %307 = vector.broadcast %cst_110 : f32 to vector<16x64xf32>
    %308 = arith.mulf %304, %307 : vector<16x64xf32>
    %309 = math.erf %308 : vector<16x64xf32>
    %cst_111 = arith.constant 1.000000e+00 : f32
    %310 = vector.broadcast %cst_111 : f32 to vector<16x64xf32>
    %311 = arith.addf %310, %309 : vector<16x64xf32>
    %312 = arith.mulf %306, %311 : vector<16x64xf32>
    %c160 = arith.constant 160 : index
    %c0_112 = arith.constant 0 : index
    %313 = vector.load %arg1[%c160, %c0_112] : memref<256x256xbf16, #tpu.memory_space<vmem>>, vector<64x32xbf16>
    %314 = arith.truncf %312 : vector<16x64xf32> to vector<16x64xbf16>
    %cst_113 = arith.constant dense<0.000000e+00> : vector<16x32xf32>
    %315 = tpu.matmul %314, %313, %cst_113 {dimension_numbers = #tpu.dot_dimension_numbers<[1], [0], [0], [1], [0, 0, 1, 1], [], []>} : vector<16x64xbf16>, vector<64x32xbf16>, vector<16x32xf32> -> vector<16x32xf32>
    %c19 = arith.constant 19 : index
    %c0_114 = arith.constant 0 : index
    %316 = vector.load %arg2[%c19, %c0_114] : memref<32x128xf32, #tpu.memory_space<vmem>>, vector<1x32xf32>
    %317 = vector.broadcast %316 : vector<1x32xf32> to vector<16x32xf32>
    %318 = arith.addf %315, %317 : vector<16x32xf32>
    %c128_115 = arith.constant 128 : index
    %c208_116 = arith.constant 208 : index
    %319 = vector.load %arg1[%c128_115, %c208_116] : memref<256x256xbf16, #tpu.memory_space<vmem>>, vector<32x16xbf16>
    %320 = arith.truncf %318 : vector<16x32xf32> to vector<16x32xbf16>
    %cst_117 = arith.constant dense<0.000000e+00> : vector<16x16xf32>
    %321 = tpu.matmul %320, %319, %cst_117 {dimension_numbers = #tpu.dot_dimension_numbers<[1], [0], [0], [1], [0, 0, 1, 1], [], []>} : vector<16x32xbf16>, vector<32x16xbf16>, vector<16x16xf32> -> vector<16x16xf32>
    %c24 = arith.constant 24 : index
    %c0_118 = arith.constant 0 : index
    %322 = vector.load %arg2[%c24, %c0_118] : memref<32x128xf32, #tpu.memory_space<vmem>>, vector<1x16xf32>
    %323 = vector.broadcast %322 : vector<1x16xf32> to vector<16x16xf32>
    %324 = arith.addf %321, %323 : vector<16x16xf32>
    %cst_119 = arith.constant 5.000000e-01 : f32
    %325 = vector.broadcast %cst_119 : f32 to vector<16x16xf32>
    %326 = arith.mulf %325, %324 : vector<16x16xf32>
    %cst_120 = arith.constant 0.707106769 : f32
    %327 = vector.broadcast %cst_120 : f32 to vector<16x16xf32>
    %328 = arith.mulf %324, %327 : vector<16x16xf32>
    %329 = math.erf %328 : vector<16x16xf32>
    %cst_121 = arith.constant 1.000000e+00 : f32
    %330 = vector.broadcast %cst_121 : f32 to vector<16x16xf32>
    %331 = arith.addf %330, %329 : vector<16x16xf32>
    %332 = arith.mulf %326, %331 : vector<16x16xf32>
    %c240 = arith.constant 240 : index
    %c0_122 = arith.constant 0 : index
    %333 = vector.load %arg1[%c240, %c0_122] : memref<256x256xbf16, #tpu.memory_space<vmem>>, vector<16x32xbf16>
    %334 = arith.truncf %332 : vector<16x16xf32> to vector<16x16xbf16>
    %cst_123 = arith.constant dense<0.000000e+00> : vector<16x32xf32>
    %335 = tpu.matmul %334, %333, %cst_123 {dimension_numbers = #tpu.dot_dimension_numbers<[1], [0], [0], [1], [0, 0, 1, 1], [], []>} : vector<16x16xbf16>, vector<16x32xbf16>, vector<16x32xf32> -> vector<16x32xf32>
    %336 = arith.addf %318, %335 : vector<16x32xf32>
    %c25 = arith.constant 25 : index
    %c0_124 = arith.constant 0 : index
    %337 = vector.load %arg2[%c25, %c0_124] : memref<32x128xf32, #tpu.memory_space<vmem>>, vector<1x32xf32>
    %338 = vector.broadcast %337 : vector<1x32xf32> to vector<16x32xf32>
    %339 = arith.addf %336, %338 : vector<16x32xf32>
    %340 = arith.addf %339, %298 : vector<16x32xf32>
    %c20 = arith.constant 20 : index
    %c0_125 = arith.constant 0 : index
    %341 = vector.load %arg2[%c20, %c0_125] : memref<32x128xf32, #tpu.memory_space<vmem>>, vector<1x32xf32>
    %c21 = arith.constant 21 : index
    %c0_126 = arith.constant 0 : index
    %342 = vector.load %arg2[%c21, %c0_126] : memref<32x128xf32, #tpu.memory_space<vmem>>, vector<1x32xf32>
    %cst_127 = arith.constant dense<0.000000e+00> : vector<16xf32>
    %343 = vector.multi_reduction <add>, %340, %cst_127 [1] : vector<16x32xf32> to vector<16xf32>
    %344 = vector.shape_cast %343 : vector<16xf32> to vector<16x1xf32>
    %cst_128 = arith.constant 3.200000e+01 : f32
    %345 = vector.broadcast %cst_128 : f32 to vector<16x1xf32>
    %346 = arith.divf %344, %345 : vector<16x1xf32>
    %347 = vector.broadcast %346 : vector<16x1xf32> to vector<16x32xf32>
    %348 = arith.subf %340, %347 : vector<16x32xf32>
    %349 = arith.mulf %348, %348 : vector<16x32xf32>
    %cst_129 = arith.constant dense<0.000000e+00> : vector<16xf32>
    %350 = vector.multi_reduction <add>, %349, %cst_129 [1] : vector<16x32xf32> to vector<16xf32>
    %351 = vector.shape_cast %350 : vector<16xf32> to vector<16x1xf32>
    %cst_130 = arith.constant 3.200000e+01 : f32
    %352 = vector.broadcast %cst_130 : f32 to vector<16x1xf32>
    %353 = arith.divf %351, %352 : vector<16x1xf32>
    %354 = vector.broadcast %346 : vector<16x1xf32> to vector<16x32xf32>
    %355 = arith.subf %340, %354 : vector<16x32xf32>
    %cst_131 = arith.constant 9.99999996E-13 : f32
    %356 = vector.broadcast %cst_131 : f32 to vector<16x1xf32>
    %357 = arith.addf %353, %356 : vector<16x1xf32>
    %358 = math.rsqrt %357 : vector<16x1xf32>
    %359 = vector.broadcast %358 : vector<16x1xf32> to vector<16x32xf32>
    %360 = arith.mulf %355, %359 : vector<16x32xf32>
    %361 = vector.broadcast %341 : vector<1x32xf32> to vector<16x32xf32>
    %362 = arith.mulf %360, %361 : vector<16x32xf32>
    %363 = vector.broadcast %342 : vector<1x32xf32> to vector<16x32xf32>
    %364 = arith.addf %362, %363 : vector<16x32xf32>
    %365 = arith.truncf %26 : vector<8x16xf32> to vector<8x16xbf16>
    %366 = arith.truncf %364 : vector<16x32xf32> to vector<16x32xbf16>
    %cst_132 = arith.constant dense<0.000000e+00> : vector<8x32xf32>
    %367 = tpu.matmul %365, %366, %cst_132 {dimension_numbers = #tpu.dot_dimension_numbers<[1], [0], [0], [1], [0, 0, 1, 1], [], []>} : vector<8x16xbf16>, vector<16x32xbf16>, vector<8x32xf32> -> vector<8x32xf32>
    %cst_133 = arith.constant 0.000000e+00 : f32
    %368 = vector.broadcast %cst_133 : f32 to vector<8x96xf32>
    %369 = tpu.concatenate %367, %368 in 1 : vector<8x32xf32>, vector<8x96xf32> -> vector<8x128xf32>
    %c0_134 = arith.constant 0 : index
    %c0_135 = arith.constant 0 : index
    %370 = vector.load %arg3[%c0_134, %c0_135] : memref<8x128xf32, #tpu.memory_space<vmem>>, vector<8x128xf32>
    tpu.vector_store %arg3[%c0_134, %c0_135], %369 {strides = array<i32>} : memref<8x128xf32, #tpu.memory_space<vmem>>, vector<8x128xf32>,
    return
  }
}

</mosaic_0001>

<llo_original>
// kernel: adapter_pgn_bert_forward.1
$region0: #{adapter_pgn_bert_forward.1}
  #allocation0 [shape = 'u32[]', space=smem, size = 0x4, offset = 0x4, fixed_abs, tag = 'smem constant byte address 0x4 - core index']
  #allocation1 [shape = 'u32[144,128]{1,0:T(1,128)}', space=vmem, size = 0x12000, scoped, tag = 'internal scratch']
  %s0 = inlined_call_operand.vmem [shape: f32[16,128], index: 0, kind: input, shape index: {}]
  %s1 = inlined_call_operand.vmem [shape: bf16[256,256], index: 1, kind: input, shape index: {}]
  %s2 = inlined_call_operand.vmem [shape: f32[32,128], index: 2, kind: input, shape index: {}]
  %s3 = inlined_call_operand.hbm [shape: f32[8,128], index: 3, kind: output, shape index: {}]
  %s4 = sld [smem:[#allocation0]]
  $region22: #{adapter_pgn_bert_forward.1} parent=0
    _
  %s6 = ssub.s32 1, %s4
  %s7 = scalar_select 0, %s6, %s4
  $region1: #{adapter_pgn_bert_forward.1} parent=0
    #allocation2 [shape = 'u8[4096]{0}', space=vmem, size = 0x1000, scoped, tag = 'output window, operand 0, single buffered']
    #allocation3 [shape = 's32[1]{0}', space=sflag, size = 0x4, scoped, tag = 'scoped memory for adapter_pgn_bert_forward.1']
    %8 = vsyncpa [#allocation3], 0
    // Predicated region
    $region2: #{adapter_pgn_bert_forward.1} parent=1 // pred_check
      _
    $region3: #{adapter_pgn_bert_forward.1} parent=1 // pred_check_branch
      %10 = sbr.rel (0) target = $region5
    $region4: #{adapter_pgn_bert_forward.1} parent=1 // pred_region
      _
    $region5: #{adapter_pgn_bert_forward.1} parent=1 // pred_fallthru
      _
    // Predicated region
    $region6: #{adapter_pgn_bert_forward.1} parent=1 // pred_check
      _
    $region7: #{adapter_pgn_bert_forward.1} parent=1 // pred_check_branch
      %12 = sbr.rel (0) target = $region9
    $region8: #{adapter_pgn_bert_forward.1} parent=1 // pred_region
      _
    $region9: #{adapter_pgn_bert_forward.1} parent=1 // pred_fallthru
      _
    // Predicated region
    $region10: #{adapter_pgn_bert_forward.1} parent=1 // pred_check
      _
    $region11: #{adapter_pgn_bert_forward.1} parent=1 // pred_check_branch
      %14 = sbr.rel (0) target = $region13
    $region12: #{adapter_pgn_bert_forward.1} parent=1 // pred_region
      _
    $region13: #{adapter_pgn_bert_forward.1} parent=1 // pred_fallthru
      _
    %v16 = vld [vmem:[%s0] sm:$0xff]
    %v17 = vld [vmem:[%s0 + $0x8] sm:$0xff]
    %v18 = vld [vmem:[%s2] sm:$0x1]
    %v19 = vld [vmem:[%s2 + $0x1] sm:$0x1]
    %vm20 = vcmask 261120
    %v21 = vsel %vm20, %v16, 0.0
    %22 = vadd.xlane.f32.xlu0 %v21
    %v23 = vpop.xlane.xlu0 %22
    %v24 = vsel %vm20, %v17, 0.0
    %25 = vadd.xlane.f32.xlu0 %v24
    %v26 = vpop.xlane.xlu0 %25
    %v27 = vrcp.pop 32.0
    %v28 = vmul.f32 %v23, %v27
    %v29 = vmul.f32 %v26, %v27
    %v30 = vsub.f32 %v16, %v28
    %v31 = vsub.f32 %v17, %v29
    %v32 = vmul.f32 %v30, %v30
    %v33 = vmul.f32 %v31, %v31
    %v34 = vsel %vm20, %v32, 0.0
    %35 = vadd.xlane.f32.xlu0 %v34
    %v36 = vpop.xlane.xlu0 %35
    %v37 = vsel %vm20, %v33, 0.0
    %38 = vadd.xlane.f32.xlu0 %v37
    %v39 = vpop.xlane.xlu0 %38
    %v40 = vmul.f32 %v36, %v27
    %v41 = vmul.f32 %v39, %v27
    %v42 = vadd.f32 %v40, 1e-12
    %v43 = vadd.f32 %v41, 1e-12
    %v44 = vrsqrt.pop %v42
    %v45 = vrsqrt.pop %v43
    %v46 = vmul.f32 %v30, %v44
    %v47 = vmul.f32 %v31, %v45
    %v48 = vlaneseq
    %v49 = vshrl.u32 %v48, 7
    %v50 = vsub.s32 0, %v49
    %v51 = vrot.slane %v18, %v50
    %v52 = vmul.f32 %v46, %v51
    %v53 = vmul.f32 %v47, %v51
    %v54 = vlaneseq
    %v55 = vshrl.u32 %v54, 7
    %v56 = vsub.s32 0, %v55
    %v57 = vrot.slane %v19, %v56
    %v58 = vadd.f32 %v52, %v57
    %v59 = vadd.f32 %v53, %v57
    %v60 = vld [vmem:[%s0] sm:$0xff]
    %v61 = vld [vmem:[%s1] sm:$0xf]
    %v62 = vld [vmem:[%s1 + $0x8] sm:$0xf]
    %v63 = vld [vmem:[%s1 + $0x10] sm:$0xf]
    %v64 = vld [vmem:[%s1 + $0x18] sm:$0xf]
    %v65 = vpack.c.bf16 %v59, %v58
    %v66 = vld [vmem:[%s2 + $0x2] sm:$0x1]
    %v67 = vlaneseq
    %v68 = vshrl.u32 %v67, 7
    %v69 = vsub.s32 0, %v68
    %v70 = vrot.slane %v66, %v69
    %v75 = vunpack.c.l.b16 %v61
    %v76 = vunpack.c.l.b16 %v62
    %v77 = vunpack.c.l.b16 %v63
    %v78 = vunpack.c.l.b16 %v64
    %v79 = vpack.c.b16 %v76, %v75
    %v80 = vpack.c.b16 %v78, %v77
    %v84 = vsel %vm20, %v65, 0
    %86 = vmatprep.subr.bf16.mxu0 0
    %87 = vmatpush1.bf16.msra.mxu0 0
    %88 = vmatprep.subr.bf16.mxu0 0
    %89 = vmatpush1.bf16.msra.mxu0 0
    %90 = vmatprep.subr.bf16.mxu0 0
    %91 = vmatpush1.bf16.msra.mxu0 0
    %92 = vmatprep.subr.bf16.mxu0 0
    %93 = vmatpush1.bf16.msra.mxu0 0
    %94 = vmatprep.subr.bf16.mxu0 0
    %95 = vmatpush1.bf16.msra.mxu0 0
    %96 = vmatprep.subr.bf16.mxu0 0
    %97 = vmatpush1.bf16.msra.mxu0 0
    %98 = vmatprep.subr.bf16.mxu0 0
    %99 = vmatpush1.bf16.msra.mxu0 %v80
    %100 = vmatprep.subr.bf16.mxu0 0
    %101 = vmatpush1.bf16.msra.mxu0 %v79
    %102 = vmatprep.subr.bf16.mxu0 0
    %103 = vmatpush2.bf16.msra.mxu0 0
    %104 = vmatprep.subr.bf16.mxu0 0
    %105 = vmatpush2.bf16.msra.mxu0 0
    %106 = vmatprep.subr.bf16.mxu0 0
    %107 = vmatpush2.bf16.msra.mxu0 0
    %108 = vmatprep.subr.bf16.mxu0 0
    %109 = vmatpush2.bf16.msra.mxu0 0
    %110 = vmatprep.subr.bf16.mxu0 0
    %111 = vmatpush2.bf16.msra.mxu0 0
    %112 = vmatprep.subr.bf16.mxu0 0
    %113 = vmatpush2.bf16.msra.mxu0 0
    %114 = vmatprep.subr.bf16.mxu0 0
    %115 = vmatpush2.bf16.msra.mxu0 0
    %116 = vmatprep.subr.bf16.mxu0 0
    %117 = vmatpush2.bf16.msra.mxu0 0
    %118 = vmatprep.mubr.bf16.mxu0 0
    %119 = vmatmul.mubr.bf16.gmra.mxu0 %v84
    %v120 = vpop.f32.mrf.mxu0
    %v121 = vadd.f32 %v70, %v120
    %v122 = vpop.f32.mrf.mxu0
    %v123 = vpop.f32.mrf.mxu0
    %v124 = vadd.f32 %v70, %v123
    %v125 = vpop.f32.mrf.mxu0
    %126 = vdwg.mxu0
    %v127 = vpack.c.bf16 %v124, %v121
    %129 = vrot.lane.b32.xlu0 %v127, 96
    %v130 = vpop.permute.xlu0 %129
    %vm131 = vcmask 130048
    %v133 = vsel %vm131, %v127, 0
    %v136 = vsel %vm131, %v130, 0
    %138 = vmatprep.subr.bf16.mxu0 0
    %139 = vmatpush1.bf16.xpose.msra.mxu0 0
    %140 = vmatprep.subr.bf16.mxu0 0
    %141 = vmatpush1.bf16.xpose.msra.mxu0 0
    %142 = vmatprep.subr.bf16.mxu0 0
    %143 = vmatpush1.bf16.xpose.msra.mxu0 0
    %144 = vmatprep.subr.bf16.mxu0 0
    %145 = vmatpush1.bf16.xpose.msra.mxu0 0
    %146 = vmatprep.subr.bf16.mxu0 0
    %147 = vmatpush1.bf16.xpose.msra.mxu0 0
    %148 = vmatprep.subr.bf16.mxu0 0
    %149 = vmatpush1.bf16.xpose.msra.mxu0 0
    %150 = vmatprep.subr.bf16.mxu0 0
    %151 = vmatpush1.bf16.xpose.msra.mxu0 0
    %152 = vmatprep.subr.bf16.mxu0 0
    %153 = vmatpush1.bf16.xpose.msra.mxu0 %v136
    %154 = vmatprep.subr.bf16.mxu0 0
    %155 = vmatpush2.bf16.xpose.msra.mxu0 0
    %156 = vmatprep.subr.bf16.mxu0 0
    %157 = vmatpush2.bf16.xpose.msra.mxu0 0
    %158 = vmatprep.subr.bf16.mxu0 0
    %159 = vmatpush2.bf16.xpose.msra.mxu0 0
    %160 = vmatprep.subr.bf16.mxu0 0
    %161 = vmatpush2.bf16.xpose.msra.mxu0 0
    %162 = vmatprep.subr.bf16.mxu0 0
    %163 = vmatpush2.bf16.xpose.msra.mxu0 0
    %164 = vmatprep.subr.bf16.mxu0 0
    %165 = vmatpush2.bf16.xpose.msra.mxu0 0
    %166 = vmatprep.subr.bf16.mxu0 0
    %167 = vmatpush2.bf16.xpose.msra.mxu0 0
    %168 = vmatprep.subr.bf16.mxu0 0
    %169 = vmatpush2.bf16.xpose.msra.mxu0 0
    %170 = vmatprep.mubr.bf16.mxu0 0
    %171 = vmatmul.mubr.bf16.gmra.mxu0 %v133
    %v172 = vpop.f32.mrf.mxu0
    %v173 = vadd.f32 0.0, %v172
    %v174 = vpop.f32.mrf.mxu0
    %v175 = vpop.f32.mrf.mxu0
    %v176 = vadd.f32 0.0, %v175
    %v177 = vpop.f32.mrf.mxu0
    %178 = vdwg.mxu0
    %v179 = vmul.f32 %v173, 0.25
    %v180 = vmul.f32 %v176, 0.25
    %183 = vrot.lane.b32.xlu0 %v16, 96
    %v184 = vpop.permute.xlu0 %183
    %185 = vrot.lane.b32.xlu0 %v17, 96
    %v186 = vpop.permute.xlu0 %185
    %v189 = vadd.f32 %v179, %v184
    %v190 = vadd.f32 %v180, %v186
    %v191 = vsel %vm131, %v189, -inf
    %192 = vmax.xlane.f32.xlu0 %v191
    %v193 = vpop.xlane.xlu0 %192
    %v194 = vsel %vm131, %v190, -inf
    %195 = vmax.xlane.f32.xlu0 %v194
    %v196 = vpop.xlane.xlu0 %195
    %v197 = vsub.f32 %v189, %v193
    %v198 = vsub.f32 %v190, %v196
    %v199 = vmul.f32 %v197, 1.442695
    %v200 = vpow.pop %v199
    %v201 = vmul.f32 %v198, 1.442695
    %v202 = vpow.pop %v201
    %v203 = vsel %vm131, %v200, 0.0
    %204 = vadd.xlane.f32.xlu0 %v203
    %v205 = vpop.xlane.xlu0 %204
    %v206 = vsel %vm131, %v202, 0.0
    %207 = vadd.xlane.f32.xlu0 %v206
    %v208 = vpop.xlane.xlu0 %207
    %v209 = vrcp.pop %v205
    %v210 = vrcp.pop %v208
    %v211 = vmul.f32 %v200, %v209
    %v212 = vmul.f32 %v202, %v210
    %v213 = vpack.c.bf16 %v212, %v211
    %214 = vrot.lane.b32.xlu0 %v127, 64
    %v215 = vpop.permute.xlu0 %214
    %v218 = vsel %vm131, %v213, 0
    %220 = vmatprep.subr.bf16.mxu0 0
    %221 = vmatpush1.bf16.msra.mxu0 0
    %222 = vmatprep.subr.bf16.mxu0 0
    %223 = vmatpush1.bf16.msra.mxu0 0
    %224 = vmatprep.subr.bf16.mxu0 0
    %225 = vmatpush1.bf16.msra.mxu0 0
    %226 = vmatprep.subr.bf16.mxu0 0
    %227 = vmatpush1.bf16.msra.mxu0 0
    %228 = vmatprep.subr.bf16.mxu0 0
    %229 = vmatpush1.bf16.msra.mxu0 0
    %230 = vmatprep.subr.bf16.mxu0 0
    %231 = vmatpush1.bf16.msra.mxu0 0
    %232 = vmatprep.subr.bf16.mxu0 0
    %233 = vmatpush1.bf16.msra.mxu0 0
    %234 = vmatprep.subr.bf16.mxu0 0
    %235 = vmatpush1.bf16.msra.mxu0 %v215
    %236 = vmatprep.subr.bf16.mxu0 0
    %237 = vmatpush2.bf16.msra.mxu0 0
    %238 = vmatprep.subr.bf16.mxu0 0
    %239 = vmatpush2.bf16.msra.mxu0 0
    %240 = vmatprep.subr.bf16.mxu0 0
    %241 = vmatpush2.bf16.msra.mxu0 0
    %242 = vmatprep.subr.bf16.mxu0 0
    %243 = vmatpush2.bf16.msra.mxu0 0
    %244 = vmatprep.subr.bf16.mxu0 0
    %245 = vmatpush2.bf16.msra.mxu0 0
    %246 = vmatprep.subr.bf16.mxu0 0
    %247 = vmatpush2.bf16.msra.mxu0 0
    %248 = vmatprep.subr.bf16.mxu0 0
    %249 = vmatpush2.bf16.msra.mxu0 0
    %250 = vmatprep.subr.bf16.mxu0 0
    %251 = vmatpush2.bf16.msra.mxu0 0
    %252 = vmatprep.mubr.bf16.mxu0 0
    %253 = vmatmul.mubr.bf16.gmra.mxu0 %v218
    %v254 = vpop.f32.mrf.mxu0
    %v255 = vadd.f32 0.0, %v254
    %v256 = vpop.f32.mrf.mxu0
    %v257 = vpop.f32.mrf.mxu0
    %v258 = vadd.f32 0.0, %v257
    %v259 = vpop.f32.mrf.mxu0
    %260 = vdwg.mxu0
    %261 = vrot.lane.b32.xlu0 %v127, 112
    %v262 = vpop.permute.xlu0 %261
    %263 = vrot.lane.b32.xlu0 %v127, 80
    %v264 = vpop.permute.xlu0 %263
    %v266 = vsel %vm131, %v262, 0
    %v269 = vsel %vm131, %v264, 0
    %271 = vmatprep.subr.bf16.mxu0 0
    %272 = vmatpush1.bf16.xpose.msra.mxu0 0
    %273 = vmatprep.subr.bf16.mxu0 0
    %274 = vmatpush1.bf16.xpose.msra.mxu0 0
    %275 = vmatprep.subr.bf16.mxu0 0
    %276 = vmatpush1.bf16.xpose.msra.mxu0 0
    %277 = vmatprep.subr.bf16.mxu0 0
    %278 = vmatpush1.bf16.xpose.msra.mxu0 0
    %279 = vmatprep.subr.bf16.mxu0 0
    %280 = vmatpush1.bf16.xpose.msra.mxu0 0
    %281 = vmatprep.subr.bf16.mxu0 0
    %282 = vmatpush1.bf16.xpose.msra.mxu0 0
    %283 = vmatprep.subr.bf16.mxu0 0
    %284 = vmatpush1.bf16.xpose.msra.mxu0 0
    %285 = vmatprep.subr.bf16.mxu0 0
    %286 = vmatpush1.bf16.xpose.msra.mxu0 %v269
    %287 = vmatprep.subr.bf16.mxu0 0
    %288 = vmatpush2.bf16.xpose.msra.mxu0 0
    %289 = vmatprep.subr.bf16.mxu0 0
    %290 = vmatpush2.bf16.xpose.msra.mxu0 0
    %291 = vmatprep.subr.bf16.mxu0 0
    %292 = vmatpush2.bf16.xpose.msra.mxu0 0
    %293 = vmatprep.subr.bf16.mxu0 0
    %294 = vmatpush2.bf16.xpose.msra.mxu0 0
    %295 = vmatprep.subr.bf16.mxu0 0
    %296 = vmatpush2.bf16.xpose.msra.mxu0 0
    %297 = vmatprep.subr.bf16.mxu0 0
    %298 = vmatpush2.bf16.xpose.msra.mxu0 0
    %299 = vmatprep.subr.bf16.mxu0 0
    %300 = vmatpush2.bf16.xpose.msra.mxu0 0
    %301 = vmatprep.subr.bf16.mxu0 0
    %302 = vmatpush2.bf16.xpose.msra.mxu0 0
    %303 = vmatprep.mubr.bf16.mxu0 0
    %304 = vmatmul.mubr.bf16.gmra.mxu0 %v266
    %v305 = vpop.f32.mrf.mxu0
    %v306 = vadd.f32 0.0, %v305
    %v307 = vpop.f32.mrf.mxu0
    %v308 = vpop.f32.mrf.mxu0
    %v309 = vadd.f32 0.0, %v308
    %v310 = vpop.f32.mrf.mxu0
    %311 = vdwg.mxu0
    %v312 = vmul.f32 %v306, 0.25
    %v313 = vmul.f32 %v309, 0.25
    %v314 = vadd.f32 %v312, %v184
    %v315 = vadd.f32 %v313, %v186
    %v316 = vsel %vm131, %v314, -inf
    %317 = vmax.xlane.f32.xlu0 %v316
    %v318 = vpop.xlane.xlu0 %317
    %v319 = vsel %vm131, %v315, -inf
    %320 = vmax.xlane.f32.xlu0 %v319
    %v321 = vpop.xlane.xlu0 %320
    %v322 = vsub.f32 %v314, %v318
    %v323 = vsub.f32 %v315, %v321
    %v324 = vmul.f32 %v322, 1.442695
    %v325 = vpow.pop %v324
    %v326 = vmul.f32 %v323, 1.442695
    %v327 = vpow.pop %v326
    %v328 = vsel %vm131, %v325, 0.0
    %329 = vadd.xlane.f32.xlu0 %v328
    %v330 = vpop.xlane.xlu0 %329
    %v331 = vsel %vm131, %v327, 0.0
    %332 = vadd.xlane.f32.xlu0 %v331
    %v333 = vpop.xlane.xlu0 %332
    %v334 = vrcp.pop %v330
    %v335 = vrcp.pop %v333
    %v336 = vmul.f32 %v325, %v334
    %v337 = vmul.f32 %v327, %v335
    %v338 = vpack.c.bf16 %v337, %v336
    %339 = vrot.lane.b32.xlu0 %v127, 48
    %v340 = vpop.permute.xlu0 %339
    %v343 = vsel %vm131, %v338, 0
    %345 = vmatprep.subr.bf16.mxu0 0
    %346 = vmatpush1.bf16.msra.mxu0 0
    %347 = vmatprep.subr.bf16.mxu0 0
    %348 = vmatpush1.bf16.msra.mxu0 0
    %349 = vmatprep.subr.bf16.mxu0 0
    %350 = vmatpush1.bf16.msra.mxu0 0
    %351 = vmatprep.subr.bf16.mxu0 0
    %352 = vmatpush1.bf16.msra.mxu0 0
    %353 = vmatprep.subr.bf16.mxu0 0
    %354 = vmatpush1.bf16.msra.mxu0 0
    %355 = vmatprep.subr.bf16.mxu0 0
    %356 = vmatpush1.bf16.msra.mxu0 0
    %357 = vmatprep.subr.bf16.mxu0 0
    %358 = vmatpush1.bf16.msra.mxu0 0
    %359 = vmatprep.subr.bf16.mxu0 0
    %360 = vmatpush1.bf16.msra.mxu0 %v340
    %361 = vmatprep.subr.bf16.mxu0 0
    %362 = vmatpush2.bf16.msra.mxu0 0
    %363 = vmatprep.subr.bf16.mxu0 0
    %364 = vmatpush2.bf16.msra.mxu0 0
    %365 = vmatprep.subr.bf16.mxu0 0
    %366 = vmatpush2.bf16.msra.mxu0 0
    %367 = vmatprep.subr.bf16.mxu0 0
    %368 = vmatpush2.bf16.msra.mxu0 0
    %369 = vmatprep.subr.bf16.mxu0 0
    %370 = vmatpush2.bf16.msra.mxu0 0
    %371 = vmatprep.subr.bf16.mxu0 0
    %372 = vmatpush2.bf16.msra.mxu0 0
    %373 = vmatprep.subr.bf16.mxu0 0
    %374 = vmatpush2.bf16.msra.mxu0 0
    %375 = vmatprep.subr.bf16.mxu0 0
    %376 = vmatpush2.bf16.msra.mxu0 0
    %377 = vmatprep.mubr.bf16.mxu0 0
    %378 = vmatmul.mubr.bf16.gmra.mxu0 %v343
    %v379 = vpop.f32.mrf.mxu0
    %v380 = vadd.f32 0.0, %v379
    %v381 = vpop.f32.mrf.mxu0
    %v382 = vpop.f32.mrf.mxu0
    %v383 = vadd.f32 0.0, %v382
    %v384 = vpop.f32.mrf.mxu0
    %385 = vdwg.mxu0
    %388 = vrot.lane.b32.xlu0 %v380, 16
    %v389 = vpop.permute.xlu0 %388
    %390 = vrot.lane.b32.xlu0 %v383, 16
    %v391 = vpop.permute.xlu0 %390
    %v394 = vsel %vm131, %v255, %v389
    %v395 = vsel %vm131, %v258, %v391
    %v396 = vpack.c.bf16 %v395, %v394
    %v397 = vld [vmem:[%s2 + $0x3] sm:$0x1]
    %v398 = vlaneseq
    %v399 = vshrl.u32 %v398, 7
    %v400 = vsub.s32 0, %v399
    %v401 = vrot.slane %v397, %v400
    %402 = vrot.lane.b32.xlu0 %v79, 32
    %v403 = vpop.permute.xlu0 %402
    %404 = vrot.lane.b32.xlu0 %v80, 32
    %v405 = vpop.permute.xlu0 %404
    %v409 = vsel %vm20, %v396, 0
    %411 = vmatprep.subr.bf16.mxu0 0
    %412 = vmatpush1.bf16.msra.mxu0 0
    %413 = vmatprep.subr.bf16.mxu0 0
    %414 = vmatpush1.bf16.msra.mxu0 0
    %415 = vmatprep.subr.bf16.mxu0 0
    %416 = vmatpush1.bf16.msra.mxu0 0
    %417 = vmatprep.subr.bf16.mxu0 0
    %418 = vmatpush1.bf16.msra.mxu0 0
    %419 = vmatprep.subr.bf16.mxu0 0
    %420 = vmatpush1.bf16.msra.mxu0 0
    %421 = vmatprep.subr.bf16.mxu0 0
    %422 = vmatpush1.bf16.msra.mxu0 0
    %423 = vmatprep.subr.bf16.mxu0 0
    %424 = vmatpush1.bf16.msra.mxu0 %v405
    %425 = vmatprep.subr.bf16.mxu0 0
    %426 = vmatpush1.bf16.msra.mxu0 %v403
    %427 = vmatprep.subr.bf16.mxu0 0
    %428 = vmatpush2.bf16.msra.mxu0 0
    %429 = vmatprep.subr.bf16.mxu0 0
    %430 = vmatpush2.bf16.msra.mxu0 0
    %431 = vmatprep.subr.bf16.mxu0 0
    %432 = vmatpush2.bf16.msra.mxu0 0
    %433 = vmatprep.subr.bf16.mxu0 0
    %434 = vmatpush2.bf16.msra.mxu0 0
    %435 = vmatprep.subr.bf16.mxu0 0
    %436 = vmatpush2.bf16.msra.mxu0 0
    %437 = vmatprep.subr.bf16.mxu0 0
    %438 = vmatpush2.bf16.msra.mxu0 0
    %439 = vmatprep.subr.bf16.mxu0 0
    %440 = vmatpush2.bf16.msra.mxu0 0
    %441 = vmatprep.subr.bf16.mxu0 0
    %442 = vmatpush2.bf16.msra.mxu0 0
    %443 = vmatprep.mubr.bf16.mxu0 0
    %444 = vmatmul.mubr.bf16.gmra.mxu0 %v409
    %v445 = vpop.f32.mrf.mxu0
    %v446 = vadd.f32 %v401, %v445
    %v447 = vpop.f32.mrf.mxu0
    %v448 = vpop.f32.mrf.mxu0
    %v449 = vadd.f32 %v401, %v448
    %v450 = vpop.f32.mrf.mxu0
    %451 = vdwg.mxu0
    %v452 = vld [vmem:[%s1 + $0x4] sm:$0xf]
    %v453 = vld [vmem:[%s1 + $0xc] sm:$0xf]
    %v454 = vld [vmem:[%s1 + $0x14] sm:$0xf]
    %v455 = vld [vmem:[%s1 + $0x1c] sm:$0xf]
    %v456 = vpack.c.bf16 %v449, %v446
    %v457 = vld [vmem:[%s2 + $0xa] sm:$0x1]
    %v458 = vlaneseq
    %v459 = vshrl.u32 %v458, 7
    %v460 = vsub.s32 0, %v459
    %v461 = vrot.slane %v457, %v460
    %v466 = vunpack.c.l.b16 %v452
    %v467 = vunpack.c.l.b16 %v453
    %v468 = vunpack.c.l.b16 %v454
    %v469 = vunpack.c.l.b16 %v455
    %v470 = vpack.c.b16 %v467, %v466
    %v471 = vpack.c.b16 %v469, %v468
    %472 = vrot.lane.b32.xlu0 %v470, 64
    %v473 = vpop.permute.xlu0 %472
    %474 = vrot.lane.b32.xlu0 %v471, 64
    %v475 = vpop.permute.xlu0 %474
    %v479 = vsel %vm20, %v456, 0
    %481 = vmatprep.subr.bf16.mxu0 0
    %482 = vmatpush1.bf16.msra.mxu0 0
    %483 = vmatprep.subr.bf16.mxu0 0
    %484 = vmatpush1.bf16.msra.mxu0 0
    %485 = vmatprep.subr.bf16.mxu0 0
    %486 = vmatpush1.bf16.msra.mxu0 0
    %487 = vmatprep.subr.bf16.mxu0 0
    %488 = vmatpush1.bf16.msra.mxu0 0
    %489 = vmatprep.subr.bf16.mxu0 0
    %490 = vmatpush1.bf16.msra.mxu0 0
    %491 = vmatprep.subr.bf16.mxu0 0
    %492 = vmatpush1.bf16.msra.mxu0 0
    %493 = vmatprep.subr.bf16.mxu0 0
    %494 = vmatpush1.bf16.msra.mxu0 %v475
    %495 = vmatprep.subr.bf16.mxu0 0
    %496 = vmatpush1.bf16.msra.mxu0 %v473
    %497 = vmatprep.subr.bf16.mxu0 0
    %498 = vmatpush2.bf16.msra.mxu0 0
    %499 = vmatprep.subr.bf16.mxu0 0
    %500 = vmatpush2.bf16.msra.mxu0 0
    %501 = vmatprep.subr.bf16.mxu0 0
    %502 = vmatpush2.bf16.msra.mxu0 0
    %503 = vmatprep.subr.bf16.mxu0 0
    %504 = vmatpush2.bf16.msra.mxu0 0
    %505 = vmatprep.subr.bf16.mxu0 0
    %506 = vmatpush2.bf16.msra.mxu0 0
    %507 = vmatprep.subr.bf16.mxu0 0
    %508 = vmatpush2.bf16.msra.mxu0 0
    %509 = vmatprep.subr.bf16.mxu0 0
    %510 = vmatpush2.bf16.msra.mxu0 0
    %511 = vmatprep.subr.bf16.mxu0 0
    %512 = vmatpush2.bf16.msra.mxu0 0
    %513 = vmatprep.mubr.bf16.mxu0 0
    %514 = vmatmul.mubr.bf16.gmra.mxu0 %v479
    %v515 = vpop.f32.mrf.mxu0
    %v516 = vadd.f32 %v461, %v515
    %v517 = vpop.f32.mrf.mxu0
    %v518 = vpop.f32.mrf.mxu0
    %v519 = vadd.f32 %v461, %v518
    %v520 = vpop.f32.mrf.mxu0
    %521 = vdwg.mxu0
    %v522 = vmul.f32 %v516, 0.5
    %v523 = vmul.f32 %v519, 0.5
    %v524 = vmul.f32 %v516, 0.70710677
    %v525 = vmul.f32 %v519, 0.70710677
    %v526 = verf.f32.pop %v524
    %v527 = verf.f32.pop %v525
    %v528 = vadd.f32 %v526, 1.0
    %v529 = vadd.f32 %v527, 1.0
    %v530 = vmul.f32 %v522, %v528
    %v531 = vmul.f32 %v523, %v529
    %v532 = vld [vmem:[%s1 + $0x60] sm:$0xf]
    %v533 = vld [vmem:[%s1 + $0x68] sm:$0xf]
    %v534 = vpack.c.bf16 %v531, %v530
    %v537 = vunpack.c.l.b16 %v532
    %v538 = vunpack.c.l.b16 %v533
    %v539 = vpack.c.b16 %v538, %v537
    %v542 = vsel %vm131, %v534, 0
    %544 = vmatprep.subr.bf16.mxu0 0
    %545 = vmatpush1.bf16.msra.mxu0 0
    %546 = vmatprep.subr.bf16.mxu0 0
    %547 = vmatpush1.bf16.msra.mxu0 0
    %548 = vmatprep.subr.bf16.mxu0 0
    %549 = vmatpush1.bf16.msra.mxu0 0
    %550 = vmatprep.subr.bf16.mxu0 0
    %551 = vmatpush1.bf16.msra.mxu0 0
    %552 = vmatprep.subr.bf16.mxu0 0
    %553 = vmatpush1.bf16.msra.mxu0 0
    %554 = vmatprep.subr.bf16.mxu0 0
    %555 = vmatpush1.bf16.msra.mxu0 0
    %556 = vmatprep.subr.bf16.mxu0 0
    %557 = vmatpush1.bf16.msra.mxu0 0
    %558 = vmatprep.subr.bf16.mxu0 0
    %559 = vmatpush1.bf16.msra.mxu0 %v539
    %560 = vmatprep.subr.bf16.mxu0 0
    %561 = vmatpush2.bf16.msra.mxu0 0
    %562 = vmatprep.subr.bf16.mxu0 0
    %563 = vmatpush2.bf16.msra.mxu0 0
    %564 = vmatprep.subr.bf16.mxu0 0
    %565 = vmatpush2.bf16.msra.mxu0 0
    %566 = vmatprep.subr.bf16.mxu0 0
    %567 = vmatpush2.bf16.msra.mxu0 0
    %568 = vmatprep.subr.bf16.mxu0 0
    %569 = vmatpush2.bf16.msra.mxu0 0
    %570 = vmatprep.subr.bf16.mxu0 0
    %571 = vmatpush2.bf16.msra.mxu0 0
    %572 = vmatprep.subr.bf16.mxu0 0
    %573 = vmatpush2.bf16.msra.mxu0 0
    %574 = vmatprep.subr.bf16.mxu0 0
    %575 = vmatpush2.bf16.msra.mxu0 0
    %576 = vmatprep.mubr.bf16.mxu0 0
    %577 = vmatmul.mubr.bf16.gmra.mxu0 %v542
    %v578 = vpop.f32.mrf.mxu0
    %v579 = vadd.f32 0.0, %v578
    %v580 = vpop.f32.mrf.mxu0
    %v581 = vpop.f32.mrf.mxu0
    %v582 = vadd.f32 0.0, %v581
    %v583 = vpop.f32.mrf.mxu0
    %584 = vdwg.mxu0
    %v585 = vadd.f32 %v446, %v579
    %v586 = vadd.f32 %v449, %v582
    %v587 = vld [vmem:[%s2 + $0xb] sm:$0x1]
    %v588 = vlaneseq
    %v589 = vshrl.u32 %v588, 7
    %v590 = vsub.s32 0, %v589
    %v591 = vrot.slane %v587, %v590
    %v592 = vadd.f32 %v585, %v591
    %v593 = vadd.f32 %v586, %v591
    %v594 = vadd.f32 %v592, %v58
    %v595 = vadd.f32 %v593, %v59
    %v596 = vld [vmem:[%s2 + $0x4] sm:$0x1]
    %v597 = vld [vmem:[%s2 + $0x5] sm:$0x1]
    %v598 = vsel %vm20, %v594, 0.0
    %599 = vadd.xlane.f32.xlu0 %v598
    %v600 = vpop.xlane.xlu0 %599
    %v601 = vsel %vm20, %v595, 0.0
    %602 = vadd.xlane.f32.xlu0 %v601
    %v603 = vpop.xlane.xlu0 %602
    %v604 = vmul.f32 %v600, %v27
    %v605 = vmul.f32 %v603, %v27
    %v606 = vsub.f32 %v594, %v604
    %v607 = vsub.f32 %v595, %v605
    %v608 = vmul.f32 %v606, %v606
    %v609 = vmul.f32 %v607, %v607
    %v610 = vsel %vm20, %v608, 0.0
    %611 = vadd.xlane.f32.xlu0 %v610
    %v612 = vpop.xlane.xlu0 %611
    %v613 = vsel %vm20, %v609, 0.0
    %614 = vadd.xlane.f32.xlu0 %v613
    %v615 = vpop.xlane.xlu0 %614
    %v616 = vmul.f32 %v612, %v27
    %v617 = vmul.f32 %v615, %v27
    %v618 = vadd.f32 %v616, 1e-12
    %v619 = vadd.f32 %v617, 1e-12
    %v620 = vrsqrt.pop %v618
    %v621 = vrsqrt.pop %v619
    %v622 = vmul.f32 %v606, %v620
    %v623 = vmul.f32 %v607, %v621
    %v624 = vlaneseq
    %v625 = vshrl.u32 %v624, 7
    %v626 = vsub.s32 0, %v625
    %v627 = vrot.slane %v596, %v626
    %v628 = vmul.f32 %v622, %v627
    %v629 = vmul.f32 %v623, %v627
    %v630 = vlaneseq
    %v631 = vshrl.u32 %v630, 7
    %v632 = vsub.s32 0, %v631
    %v633 = vrot.slane %v597, %v632
    %v634 = vadd.f32 %v628, %v633
    %v635 = vadd.f32 %v629, %v633
    %v636 = vpack.c.bf16 %v635, %v634
    %v637 = vld [vmem:[%s2 + $0x6] sm:$0x1]
    %v638 = vlaneseq
    %v639 = vshrl.u32 %v638, 7
    %v640 = vsub.s32 0, %v639
    %v641 = vrot.slane %v637, %v640
    %v645 = vsel %vm20, %v636, 0
    %647 = vmatprep.subr.bf16.mxu0 0
    %648 = vmatpush1.bf16.msra.mxu0 0
    %649 = vmatprep.subr.bf16.mxu0 0
    %650 = vmatpush1.bf16.msra.mxu0 0
    %651 = vmatprep.subr.bf16.mxu0 0
    %652 = vmatpush1.bf16.msra.mxu0 0
    %653 = vmatprep.subr.bf16.mxu0 0
    %654 = vmatpush1.bf16.msra.mxu0 0
    %655 = vmatprep.subr.bf16.mxu0 0
    %656 = vmatpush1.bf16.msra.mxu0 0
    %657 = vmatprep.subr.bf16.mxu0 0
    %658 = vmatpush1.bf16.msra.mxu0 0
    %659 = vmatprep.subr.bf16.mxu0 0
    %660 = vmatpush1.bf16.msra.mxu0 %v471
    %661 = vmatprep.subr.bf16.mxu0 0
    %662 = vmatpush1.bf16.msra.mxu0 %v470
    %663 = vmatprep.subr.bf16.mxu0 0
    %664 = vmatpush2.bf16.msra.mxu0 0
    %665 = vmatprep.subr.bf16.mxu0 0
    %666 = vmatpush2.bf16.msra.mxu0 0
    %667 = vmatprep.subr.bf16.mxu0 0
    %668 = vmatpush2.bf16.msra.mxu0 0
    %669 = vmatprep.subr.bf16.mxu0 0
    %670 = vmatpush2.bf16.msra.mxu0 0
    %671 = vmatprep.subr.bf16.mxu0 0
    %672 = vmatpush2.bf16.msra.mxu0 0
    %673 = vmatprep.subr.bf16.mxu0 0
    %674 = vmatpush2.bf16.msra.mxu0 0
    %675 = vmatprep.subr.bf16.mxu0 0
    %676 = vmatpush2.bf16.msra.mxu0 0
    %677 = vmatprep.subr.bf16.mxu0 0
    %678 = vmatpush2.bf16.msra.mxu0 0
    %679 = vmatprep.mubr.bf16.mxu0 0
    %680 = vmatmul.mubr.bf16.gmra.mxu0 %v645
    %v681 = vpop.f32.mrf.mxu0
    %v682 = vadd.f32 %v641, %v681
    %v683 = vpop.f32.mrf.mxu0
    %v684 = vpop.f32.mrf.mxu0
    %v685 = vadd.f32 %v641, %v684
    %v686 = vpop.f32.mrf.mxu0
    %687 = vdwg.mxu0
    %v688 = vmul.f32 %v682, 0.5
    %v689 = vmul.f32 %v685, 0.5
    %v690 = vmul.f32 %v682, 0.70710677
    %v691 = vmul.f32 %v685, 0.70710677
    %v692 = verf.f32.pop %v690
    %v693 = verf.f32.pop %v691
    %v694 = vadd.f32 %v692, 1.0
    %v695 = vadd.f32 %v693, 1.0
    %v696 = vmul.f32 %v688, %v694
    %v697 = vmul.f32 %v689, %v695
    %v698 = vld [vmem:[%s1 + $0x20] sm:$0xf]
    %v699 = vld [vmem:[%s1 + $0x28] sm:$0xf]
    %v700 = vld [vmem:[%s1 + $0x30] sm:$0xf]
    %v701 = vld [vmem:[%s1 + $0x38] sm:$0xf]
    %v702 = vld [vmem:[%s1 + $0x40] sm:$0xf]
    %v703 = vld [vmem:[%s1 + $0x48] sm:$0xf]
    %v704 = vld [vmem:[%s1 + $0x50] sm:$0xf]
    %v705 = vld [vmem:[%s1 + $0x58] sm:$0xf]
    %v706 = vpack.c.bf16 %v697, %v696
    %v707 = vld [vmem:[%s2 + $0x7] sm:$0x1]
    %v708 = vlaneseq
    %v709 = vshrl.u32 %v708, 7
    %v710 = vsub.s32 0, %v709
    %v711 = vrot.slane %v707, %v710
    %v720 = vunpack.c.l.b16 %v698
    %v721 = vunpack.c.l.b16 %v699
    %v722 = vunpack.c.l.b16 %v700
    %v723 = vunpack.c.l.b16 %v701
    %v724 = vunpack.c.l.b16 %v702
    %v725 = vunpack.c.l.b16 %v703
    %v726 = vunpack.c.l.b16 %v704
    %v727 = vunpack.c.l.b16 %v705
    %v728 = vpack.c.b16 %v721, %v720
    %v729 = vpack.c.b16 %v723, %v722
    %v730 = vpack.c.b16 %v725, %v724
    %v731 = vpack.c.b16 %v727, %v726
    %vm736 = vcmask 523264
    %v738 = vsel %vm736, %v706, 0
    %740 = vmatprep.subr.bf16.mxu0 0
    %741 = vmatpush1.bf16.msra.mxu0 0
    %742 = vmatprep.subr.bf16.mxu0 0
    %743 = vmatpush1.bf16.msra.mxu0 0
    %744 = vmatprep.subr.bf16.mxu0 0
    %745 = vmatpush1.bf16.msra.mxu0 0
    %746 = vmatprep.subr.bf16.mxu0 0
    %747 = vmatpush1.bf16.msra.mxu0 0
    %748 = vmatprep.subr.bf16.mxu0 0
    %749 = vmatpush1.bf16.msra.mxu0 %v731
    %750 = vmatprep.subr.bf16.mxu0 0
    %751 = vmatpush1.bf16.msra.mxu0 %v730
    %752 = vmatprep.subr.bf16.mxu0 0
    %753 = vmatpush1.bf16.msra.mxu0 %v729
    %754 = vmatprep.subr.bf16.mxu0 0
    %755 = vmatpush1.bf16.msra.mxu0 %v728
    %756 = vmatprep.subr.bf16.mxu0 0
    %757 = vmatpush2.bf16.msra.mxu0 0
    %758 = vmatprep.subr.bf16.mxu0 0
    %759 = vmatpush2.bf16.msra.mxu0 0
    %760 = vmatprep.subr.bf16.mxu0 0
    %761 = vmatpush2.bf16.msra.mxu0 0
    %762 = vmatprep.subr.bf16.mxu0 0
    %763 = vmatpush2.bf16.msra.mxu0 0
    %764 = vmatprep.subr.bf16.mxu0 0
    %765 = vmatpush2.bf16.msra.mxu0 0
    %766 = vmatprep.subr.bf16.mxu0 0
    %767 = vmatpush2.bf16.msra.mxu0 0
    %768 = vmatprep.subr.bf16.mxu0 0
    %769 = vmatpush2.bf16.msra.mxu0 0
    %770 = vmatprep.subr.bf16.mxu0 0
    %771 = vmatpush2.bf16.msra.mxu0 0
    %772 = vmatprep.mubr.bf16.mxu0 0
    %773 = vmatmul.mubr.bf16.gmra.mxu0 %v738
    %v774 = vpop.f32.mrf.mxu0
    %v775 = vadd.f32 %v711, %v774
    %v776 = vpop.f32.mrf.mxu0
    %v777 = vpop.f32.mrf.mxu0
    %v778 = vadd.f32 %v711, %v777
    %v779 = vpop.f32.mrf.mxu0
    %780 = vdwg.mxu0
    %v781 = vpack.c.bf16 %v778, %v775
    %v782 = vld [vmem:[%s2 + $0xc] sm:$0x1]
    %v783 = vlaneseq
    %v784 = vshrl.u32 %v783, 7
    %v785 = vsub.s32 0, %v784
    %v786 = vrot.slane %v782, %v785
    %787 = vrot.lane.b32.xlu0 %v470, 48
    %v788 = vpop.permute.xlu0 %787
    %789 = vrot.lane.b32.xlu0 %v471, 48
    %v790 = vpop.permute.xlu0 %789
    %v794 = vsel %vm20, %v781, 0
    %796 = vmatprep.subr.bf16.mxu0 0
    %797 = vmatpush1.bf16.msra.mxu0 0
    %798 = vmatprep.subr.bf16.mxu0 0
    %799 = vmatpush1.bf16.msra.mxu0 0
    %800 = vmatprep.subr.bf16.mxu0 0
    %801 = vmatpush1.bf16.msra.mxu0 0
    %802 = vmatprep.subr.bf16.mxu0 0
    %803 = vmatpush1.bf16.msra.mxu0 0
    %804 = vmatprep.subr.bf16.mxu0 0
    %805 = vmatpush1.bf16.msra.mxu0 0
    %806 = vmatprep.subr.bf16.mxu0 0
    %807 = vmatpush1.bf16.msra.mxu0 0
    %808 = vmatprep.subr.bf16.mxu0 0
    %809 = vmatpush1.bf16.msra.mxu0 %v790
    %810 = vmatprep.subr.bf16.mxu0 0
    %811 = vmatpush1.bf16.msra.mxu0 %v788
    %812 = vmatprep.subr.bf16.mxu0 0
    %813 = vmatpush2.bf16.msra.mxu0 0
    %814 = vmatprep.subr.bf16.mxu0 0
    %815 = vmatpush2.bf16.msra.mxu0 0
    %816 = vmatprep.subr.bf16.mxu0 0
    %817 = vmatpush2.bf16.msra.mxu0 0
    %818 = vmatprep.subr.bf16.mxu0 0
    %819 = vmatpush2.bf16.msra.mxu0 0
    %820 = vmatprep.subr.bf16.mxu0 0
    %821 = vmatpush2.bf16.msra.mxu0 0
    %822 = vmatprep.subr.bf16.mxu0 0
    %823 = vmatpush2.bf16.msra.mxu0 0
    %824 = vmatprep.subr.bf16.mxu0 0
    %825 = vmatpush2.bf16.msra.mxu0 0
    %826 = vmatprep.subr.bf16.mxu0 0
    %827 = vmatpush2.bf16.msra.mxu0 0
    %828 = vmatprep.mubr.bf16.mxu0 0
    %829 = vmatmul.mubr.bf16.gmra.mxu0 %v794
    %v830 = vpop.f32.mrf.mxu0
    %v831 = vadd.f32 %v786, %v830
    %v832 = vpop.f32.mrf.mxu0
    %v833 = vpop.f32.mrf.mxu0
    %v834 = vadd.f32 %v786, %v833
    %v835 = vpop.f32.mrf.mxu0
    %836 = vdwg.mxu0
    %v837 = vmul.f32 %v831, 0.5
    %v838 = vmul.f32 %v834, 0.5
    %v839 = vmul.f32 %v831, 0.70710677
    %v840 = vmul.f32 %v834, 0.70710677
    %v841 = verf.f32.pop %v839
    %v842 = verf.f32.pop %v840
    %v843 = vadd.f32 %v841, 1.0
    %v844 = vadd.f32 %v842, 1.0
    %v845 = vmul.f32 %v837, %v843
    %v846 = vmul.f32 %v838, %v844
    %v847 = vld [vmem:[%s1 + $0x70] sm:$0xf]
    %v848 = vld [vmem:[%s1 + $0x78] sm:$0xf]
    %v849 = vpack.c.bf16 %v846, %v845
    %v852 = vunpack.c.l.b16 %v847
    %v853 = vunpack.c.l.b16 %v848
    %v854 = vpack.c.b16 %v853, %v852
    %v857 = vsel %vm131, %v849, 0
    %859 = vmatprep.subr.bf16.mxu0 0
    %860 = vmatpush1.bf16.msra.mxu0 0
    %861 = vmatprep.subr.bf16.mxu0 0
    %862 = vmatpush1.bf16.msra.mxu0 0
    %863 = vmatprep.subr.bf16.mxu0 0
    %864 = vmatpush1.bf16.msra.mxu0 0
    %865 = vmatprep.subr.bf16.mxu0 0
    %866 = vmatpush1.bf16.msra.mxu0 0
    %867 = vmatprep.subr.bf16.mxu0 0
    %868 = vmatpush1.bf16.msra.mxu0 0
    %869 = vmatprep.subr.bf16.mxu0 0
    %870 = vmatpush1.bf16.msra.mxu0 0
    %871 = vmatprep.subr.bf16.mxu0 0
    %872 = vmatpush1.bf16.msra.mxu0 0
    %873 = vmatprep.subr.bf16.mxu0 0
    %874 = vmatpush1.bf16.msra.mxu0 %v854
    %875 = vmatprep.subr.bf16.mxu0 0
    %876 = vmatpush2.bf16.msra.mxu0 0
    %877 = vmatprep.subr.bf16.mxu0 0
    %878 = vmatpush2.bf16.msra.mxu0 0
    %879 = vmatprep.subr.bf16.mxu0 0
    %880 = vmatpush2.bf16.msra.mxu0 0
    %881 = vmatprep.subr.bf16.mxu0 0
    %882 = vmatpush2.bf16.msra.mxu0 0
    %883 = vmatprep.subr.bf16.mxu0 0
    %884 = vmatpush2.bf16.msra.mxu0 0
    %885 = vmatprep.subr.bf16.mxu0 0
    %886 = vmatpush2.bf16.msra.mxu0 0
    %887 = vmatprep.subr.bf16.mxu0 0
    %888 = vmatpush2.bf16.msra.mxu0 0
    %889 = vmatprep.subr.bf16.mxu0 0
    %890 = vmatpush2.bf16.msra.mxu0 0
    %891 = vmatprep.mubr.bf16.mxu0 0
    %892 = vmatmul.mubr.bf16.gmra.mxu0 %v857
    %v893 = vpop.f32.mrf.mxu0
    %v894 = vadd.f32 0.0, %v893
    %v895 = vpop.f32.mrf.mxu0
    %v896 = vpop.f32.mrf.mxu0
    %v897 = vadd.f32 0.0, %v896
    %v898 = vpop.f32.mrf.mxu0
    %899 = vdwg.mxu0
    %v900 = vadd.f32 %v775, %v894
    %v901 = vadd.f32 %v778, %v897
    %v902 = vld [vmem:[%s2 + $0xd] sm:$0x1]
    %v903 = vlaneseq
    %v904 = vshrl.u32 %v903, 7
    %v905 = vsub.s32 0, %v904
    %v906 = vrot.slane %v902, %v905
    %v907 = vadd.f32 %v900, %v906
    %v908 = vadd.f32 %v901, %v906
    %v909 = vadd.f32 %v907, %v634
    %v910 = vadd.f32 %v908, %v635
    %v911 = vld [vmem:[%s2 + $0x8] sm:$0x1]
    %v912 = vld [vmem:[%s2 + $0x9] sm:$0x1]
    %v913 = vsel %vm20, %v909, 0.0
    %914 = vadd.xlane.f32.xlu0 %v913
    %v915 = vpop.xlane.xlu0 %914
    %v916 = vsel %vm20, %v910, 0.0
    %917 = vadd.xlane.f32.xlu0 %v916
    %v918 = vpop.xlane.xlu0 %917
    %v919 = vmul.f32 %v915, %v27
    %v920 = vmul.f32 %v918, %v27
    %v921 = vsub.f32 %v909, %v919
    %v922 = vsub.f32 %v910, %v920
    %v923 = vmul.f32 %v921, %v921
    %v924 = vmul.f32 %v922, %v922
    %v925 = vsel %vm20, %v923, 0.0
    %926 = vadd.xlane.f32.xlu0 %v925
    %v927 = vpop.xlane.xlu0 %926
    %v928 = vsel %vm20, %v924, 0.0
    %929 = vadd.xlane.f32.xlu0 %v928
    %v930 = vpop.xlane.xlu0 %929
    %v931 = vmul.f32 %v927, %v27
    %v932 = vmul.f32 %v930, %v27
    %v933 = vadd.f32 %v931, 1e-12
    %v934 = vadd.f32 %v932, 1e-12
    %v935 = vrsqrt.pop %v933
    %v936 = vrsqrt.pop %v934
    %v937 = vmul.f32 %v921, %v935
    %v938 = vmul.f32 %v922, %v936
    %v939 = vlaneseq
    %v940 = vshrl.u32 %v939, 7
    %v941 = vsub.s32 0, %v940
    %v942 = vrot.slane %v911, %v941
    %v943 = vmul.f32 %v937, %v942
    %v944 = vmul.f32 %v938, %v942
    %v945 = vlaneseq
    %v946 = vshrl.u32 %v945, 7
    %v947 = vsub.s32 0, %v946
    %v948 = vrot.slane %v912, %v947
    %v949 = vadd.f32 %v943, %v948
    %v950 = vadd.f32 %v944, %v948
    %v951 = vld [vmem:[%s1 + $0x80] sm:$0xf]
    %v952 = vld [vmem:[%s1 + $0x88] sm:$0xf]
    %v953 = vld [vmem:[%s1 + $0x90] sm:$0xf]
    %v954 = vld [vmem:[%s1 + $0x98] sm:$0xf]
    %v955 = vpack.c.bf16 %v950, %v949
    %v956 = vld [vmem:[%s2 + $0xe] sm:$0x1]
    %v957 = vlaneseq
    %v958 = vshrl.u32 %v957, 7
    %v959 = vsub.s32 0, %v958
    %v960 = vrot.slane %v956, %v959
    %v965 = vunpack.c.l.b16 %v951
    %v966 = vunpack.c.l.b16 %v952
    %v967 = vunpack.c.l.b16 %v953
    %v968 = vunpack.c.l.b16 %v954
    %v969 = vpack.c.b16 %v966, %v965
    %v970 = vpack.c.b16 %v968, %v967
    %v974 = vsel %vm20, %v955, 0
    %976 = vmatprep.subr.bf16.mxu0 0
    %977 = vmatpush1.bf16.msra.mxu0 0
    %978 = vmatprep.subr.bf16.mxu0 0
    %979 = vmatpush1.bf16.msra.mxu0 0
    %980 = vmatprep.subr.bf16.mxu0 0
    %981 = vmatpush1.bf16.msra.mxu0 0
    %982 = vmatprep.subr.bf16.mxu0 0
    %983 = vmatpush1.bf16.msra.mxu0 0
    %984 = vmatprep.subr.bf16.mxu0 0
    %985 = vmatpush1.bf16.msra.mxu0 0
    %986 = vmatprep.subr.bf16.mxu0 0
    %987 = vmatpush1.bf16.msra.mxu0 0
    %988 = vmatprep.subr.bf16.mxu0 0
    %989 = vmatpush1.bf16.msra.mxu0 %v970
    %990 = vmatprep.subr.bf16.mxu0 0
    %991 = vmatpush1.bf16.msra.mxu0 %v969
    %992 = vmatprep.subr.bf16.mxu0 0
    %993 = vmatpush2.bf16.msra.mxu0 0
    %994 = vmatprep.subr.bf16.mxu0 0
    %995 = vmatpush2.bf16.msra.mxu0 0
    %996 = vmatprep.subr.bf16.mxu0 0
    %997 = vmatpush2.bf16.msra.mxu0 0
    %998 = vmatprep.subr.bf16.mxu0 0
    %999 = vmatpush2.bf16.msra.mxu0 0
    %1000 = vmatprep.subr.bf16.mxu0 0
    %1001 = vmatpush2.bf16.msra.mxu0 0
    %1002 = vmatprep.subr.bf16.mxu0 0
    %1003 = vmatpush2.bf16.msra.mxu0 0
    %1004 = vmatprep.subr.bf16.mxu0 0
    %1005 = vmatpush2.bf16.msra.mxu0 0
    %1006 = vmatprep.subr.bf16.mxu0 0
    %1007 = vmatpush2.bf16.msra.mxu0 0
    %1008 = vmatprep.mubr.bf16.mxu0 0
    %1009 = vmatmul.mubr.bf16.gmra.mxu0 %v974
    %v1010 = vpop.f32.mrf.mxu0
    %v1011 = vadd.f32 %v960, %v1010
    %v1012 = vpop.f32.mrf.mxu0
    %v1013 = vpop.f32.mrf.mxu0
    %v1014 = vadd.f32 %v960, %v1013
    %v1015 = vpop.f32.mrf.mxu0
    %1016 = vdwg.mxu0
    %v1017 = vpack.c.bf16 %v1014, %v1011
    %1019 = vrot.lane.b32.xlu0 %v1017, 96
    %v1020 = vpop.permute.xlu0 %1019
    %v1022 = vsel %vm131, %v1017, 0
    %v1025 = vsel %vm131, %v1020, 0
    %1027 = vmatprep.subr.bf16.mxu0 0
    %1028 = vmatpush1.bf16.xpose.msra.mxu0 0
    %1029 = vmatprep.subr.bf16.mxu0 0
    %1030 = vmatpush1.bf16.xpose.msra.mxu0 0
    %1031 = vmatprep.subr.bf16.mxu0 0
    %1032 = vmatpush1.bf16.xpose.msra.mxu0 0
    %1033 = vmatprep.subr.bf16.mxu0 0
    %1034 = vmatpush1.bf16.xpose.msra.mxu0 0
    %1035 = vmatprep.subr.bf16.mxu0 0
    %1036 = vmatpush1.bf16.xpose.msra.mxu0 0
    %1037 = vmatprep.subr.bf16.mxu0 0
    %1038 = vmatpush1.bf16.xpose.msra.mxu0 0
    %1039 = vmatprep.subr.bf16.mxu0 0
    %1040 = vmatpush1.bf16.xpose.msra.mxu0 0
    %1041 = vmatprep.subr.bf16.mxu0 0
    %1042 = vmatpush1.bf16.xpose.msra.mxu0 %v1025
    %1043 = vmatprep.subr.bf16.mxu0 0
    %1044 = vmatpush2.bf16.xpose.msra.mxu0 0
    %1045 = vmatprep.subr.bf16.mxu0 0
    %1046 = vmatpush2.bf16.xpose.msra.mxu0 0
    %1047 = vmatprep.subr.bf16.mxu0 0
    %1048 = vmatpush2.bf16.xpose.msra.mxu0 0
    %1049 = vmatprep.subr.bf16.mxu0 0
    %1050 = vmatpush2.bf16.xpose.msra.mxu0 0
    %1051 = vmatprep.subr.bf16.mxu0 0
    %1052 = vmatpush2.bf16.xpose.msra.mxu0 0
    %1053 = vmatprep.subr.bf16.mxu0 0
    %1054 = vmatpush2.bf16.xpose.msra.mxu0 0
    %1055 = vmatprep.subr.bf16.mxu0 0
    %1056 = vmatpush2.bf16.xpose.msra.mxu0 0
    %1057 = vmatprep.subr.bf16.mxu0 0
    %1058 = vmatpush2.bf16.xpose.msra.mxu0 0
    %1059 = vmatprep.mubr.bf16.mxu0 0
    %1060 = vmatmul.mubr.bf16.gmra.mxu0 %v1022
    %v1061 = vpop.f32.mrf.mxu0
    %v1062 = vadd.f32 0.0, %v1061
    %v1063 = vpop.f32.mrf.mxu0
    %v1064 = vpop.f32.mrf.mxu0
    %v1065 = vadd.f32 0.0, %v1064
    %v1066 = vpop.f32.mrf.mxu0
    %1067 = vdwg.mxu0
    %v1068 = vmul.f32 %v1062, 0.25
    %v1069 = vmul.f32 %v1065, 0.25
    %v1070 = vadd.f32 %v1068, %v184
    %v1071 = vadd.f32 %v1069, %v186
    %v1072 = vsel %vm131, %v1070, -inf
    %1073 = vmax.xlane.f32.xlu0 %v1072
    %v1074 = vpop.xlane.xlu0 %1073
    %v1075 = vsel %vm131, %v1071, -inf
    %1076 = vmax.xlane.f32.xlu0 %v1075
    %v1077 = vpop.xlane.xlu0 %1076
    %v1078 = vsub.f32 %v1070, %v1074
    %v1079 = vsub.f32 %v1071, %v1077
    %v1080 = vmul.f32 %v1078, 1.442695
    %v1081 = vpow.pop %v1080
    %v1082 = vmul.f32 %v1079, 1.442695
    %v1083 = vpow.pop %v1082
    %v1084 = vsel %vm131, %v1081, 0.0
    %1085 = vadd.xlane.f32.xlu0 %v1084
    %v1086 = vpop.xlane.xlu0 %1085
    %v1087 = vsel %vm131, %v1083, 0.0
    %1088 = vadd.xlane.f32.xlu0 %v1087
    %v1089 = vpop.xlane.xlu0 %1088
    %v1090 = vrcp.pop %v1086
    %v1091 = vrcp.pop %v1089
    %v1092 = vmul.f32 %v1081, %v1090
    %v1093 = vmul.f32 %v1083, %v1091
    %v1094 = vpack.c.bf16 %v1093, %v1092
    %1095 = vrot.lane.b32.xlu0 %v1017, 64
    %v1096 = vpop.permute.xlu0 %1095
    %v1099 = vsel %vm131, %v1094, 0
    %1101 = vmatprep.subr.bf16.mxu0 0
    %1102 = vmatpush1.bf16.msra.mxu0 0
    %1103 = vmatprep.subr.bf16.mxu0 0
    %1104 = vmatpush1.bf16.msra.mxu0 0
    %1105 = vmatprep.subr.bf16.mxu0 0
    %1106 = vmatpush1.bf16.msra.mxu0 0
    %1107 = vmatprep.subr.bf16.mxu0 0
    %1108 = vmatpush1.bf16.msra.mxu0 0
    %1109 = vmatprep.subr.bf16.mxu0 0
    %1110 = vmatpush1.bf16.msra.mxu0 0
    %1111 = vmatprep.subr.bf16.mxu0 0
    %1112 = vmatpush1.bf16.msra.mxu0 0
    %1113 = vmatprep.subr.bf16.mxu0 0
    %1114 = vmatpush1.bf16.msra.mxu0 0
    %1115 = vmatprep.subr.bf16.mxu0 0
    %1116 = vmatpush1.bf16.msra.mxu0 %v1096
    %1117 = vmatprep.subr.bf16.mxu0 0
    %1118 = vmatpush2.bf16.msra.mxu0 0
    %1119 = vmatprep.subr.bf16.mxu0 0
    %1120 = vmatpush2.bf16.msra.mxu0 0
    %1121 = vmatprep.subr.bf16.mxu0 0
    %1122 = vmatpush2.bf16.msra.mxu0 0
    %1123 = vmatprep.subr.bf16.mxu0 0
    %1124 = vmatpush2.bf16.msra.mxu0 0
    %1125 = vmatprep.subr.bf16.mxu0 0
    %1126 = vmatpush2.bf16.msra.mxu0 0
    %1127 = vmatprep.subr.bf16.mxu0 0
    %1128 = vmatpush2.bf16.msra.mxu0 0
    %1129 = vmatprep.subr.bf16.mxu0 0
    %1130 = vmatpush2.bf16.msra.mxu0 0
    %1131 = vmatprep.subr.bf16.mxu0 0
    %1132 = vmatpush2.bf16.msra.mxu0 0
    %1133 = vmatprep.mubr.bf16.mxu0 0
    %1134 = vmatmul.mubr.bf16.gmra.mxu0 %v1099
    %v1135 = vpop.f32.mrf.mxu0
    %v1136 = vadd.f32 0.0, %v1135
    %v1137 = vpop.f32.mrf.mxu0
    %v1138 = vpop.f32.mrf.mxu0
    %v1139 = vadd.f32 0.0, %v1138
    %v1140 = vpop.f32.mrf.mxu0
    %1141 = vdwg.mxu0
    %1142 = vrot.lane.b32.xlu0 %v1017, 112
    %v1143 = vpop.permute.xlu0 %1142
    %1144 = vrot.lane.b32.xlu0 %v1017, 80
    %v1145 = vpop.permute.xlu0 %1144
    %v1147 = vsel %vm131, %v1143, 0
    %v1150 = vsel %vm131, %v1145, 0
    %1152 = vmatprep.subr.bf16.mxu0 0
    %1153 = vmatpush1.bf16.xpose.msra.mxu0 0
    %1154 = vmatprep.subr.bf16.mxu0 0
    %1155 = vmatpush1.bf16.xpose.msra.mxu0 0
    %1156 = vmatprep.subr.bf16.mxu0 0
    %1157 = vmatpush1.bf16.xpose.msra.mxu0 0
    %1158 = vmatprep.subr.bf16.mxu0 0
    %1159 = vmatpush1.bf16.xpose.msra.mxu0 0
    %1160 = vmatprep.subr.bf16.mxu0 0
    %1161 = vmatpush1.bf16.xpose.msra.mxu0 0
    %1162 = vmatprep.subr.bf16.mxu0 0
    %1163 = vmatpush1.bf16.xpose.msra.mxu0 0
    %1164 = vmatprep.subr.bf16.mxu0 0
    %1165 = vmatpush1.bf16.xpose.msra.mxu0 0
    %1166 = vmatprep.subr.bf16.mxu0 0
    %1167 = vmatpush1.bf16.xpose.msra.mxu0 %v1150
    %1168 = vmatprep.subr.bf16.mxu0 0
    %1169 = vmatpush2.bf16.xpose.msra.mxu0 0
    %1170 = vmatprep.subr.bf16.mxu0 0
    %1171 = vmatpush2.bf16.xpose.msra.mxu0 0
    %1172 = vmatprep.subr.bf16.mxu0 0
    %1173 = vmatpush2.bf16.xpose.msra.mxu0 0
    %1174 = vmatprep.subr.bf16.mxu0 0
    %1175 = vmatpush2.bf16.xpose.msra.mxu0 0
    %1176 = vmatprep.subr.bf16.mxu0 0
    %1177 = vmatpush2.bf16.xpose.msra.mxu0 0
    %1178 = vmatprep.subr.bf16.mxu0 0
    %1179 = vmatpush2.bf16.xpose.msra.mxu0 0
    %1180 = vmatprep.subr.bf16.mxu0 0
    %1181 = vmatpush2.bf16.xpose.msra.mxu0 0
    %1182 = vmatprep.subr.bf16.mxu0 0
    %1183 = vmatpush2.bf16.xpose.msra.mxu0 0
    %1184 = vmatprep.mubr.bf16.mxu0 0
    %1185 = vmatmul.mubr.bf16.gmra.mxu0 %v1147
    %v1186 = vpop.f32.mrf.mxu0
    %v1187 = vadd.f32 0.0, %v1186
    %v1188 = vpop.f32.mrf.mxu0
    %v1189 = vpop.f32.mrf.mxu0
    %v1190 = vadd.f32 0.0, %v1189
    %v1191 = vpop.f32.mrf.mxu0
    %1192 = vdwg.mxu0
    %v1193 = vmul.f32 %v1187, 0.25
    %v1194 = vmul.f32 %v1190, 0.25
    %v1195 = vadd.f32 %v1193, %v184
    %v1196 = vadd.f32 %v1194, %v186
    %v1197 = vsel %vm131, %v1195, -inf
    %1198 = vmax.xlane.f32.xlu0 %v1197
    %v1199 = vpop.xlane.xlu0 %1198
    %v1200 = vsel %vm131, %v1196, -inf
    %1201 = vmax.xlane.f32.xlu0 %v1200
    %v1202 = vpop.xlane.xlu0 %1201
    %v1203 = vsub.f32 %v1195, %v1199
    %v1204 = vsub.f32 %v1196, %v1202
    %v1205 = vmul.f32 %v1203, 1.442695
    %v1206 = vpow.pop %v1205
    %v1207 = vmul.f32 %v1204, 1.442695
    %v1208 = vpow.pop %v1207
    %v1209 = vsel %vm131, %v1206, 0.0
    %1210 = vadd.xlane.f32.xlu0 %v1209
    %v1211 = vpop.xlane.xlu0 %1210
    %v1212 = vsel %vm131, %v1208, 0.0
    %1213 = vadd.xlane.f32.xlu0 %v1212
    %v1214 = vpop.xlane.xlu0 %1213
    %v1215 = vrcp.pop %v1211
    %v1216 = vrcp.pop %v1214
    %v1217 = vmul.f32 %v1206, %v1215
    %v1218 = vmul.f32 %v1208, %v1216
    %v1219 = vpack.c.bf16 %v1218, %v1217
    %1220 = vrot.lane.b32.xlu0 %v1017, 48
    %v1221 = vpop.permute.xlu0 %1220
    %v1224 = vsel %vm131, %v1219, 0
    %1226 = vmatprep.subr.bf16.mxu0 0
    %1227 = vmatpush1.bf16.msra.mxu0 0
    %1228 = vmatprep.subr.bf16.mxu0 0
    %1229 = vmatpush1.bf16.msra.mxu0 0
    %1230 = vmatprep.subr.bf16.mxu0 0
    %1231 = vmatpush1.bf16.msra.mxu0 0
    %1232 = vmatprep.subr.bf16.mxu0 0
    %1233 = vmatpush1.bf16.msra.mxu0 0
    %1234 = vmatprep.subr.bf16.mxu0 0
    %1235 = vmatpush1.bf16.msra.mxu0 0
    %1236 = vmatprep.subr.bf16.mxu0 0
    %1237 = vmatpush1.bf16.msra.mxu0 0
    %1238 = vmatprep.subr.bf16.mxu0 0
    %1239 = vmatpush1.bf16.msra.mxu0 0
    %1240 = vmatprep.subr.bf16.mxu0 0
    %1241 = vmatpush1.bf16.msra.mxu0 %v1221
    %1242 = vmatprep.subr.bf16.mxu0 0
    %1243 = vmatpush2.bf16.msra.mxu0 0
    %1244 = vmatprep.subr.bf16.mxu0 0
    %1245 = vmatpush2.bf16.msra.mxu0 0
    %1246 = vmatprep.subr.bf16.mxu0 0
    %1247 = vmatpush2.bf16.msra.mxu0 0
    %1248 = vmatprep.subr.bf16.mxu0 0
    %1249 = vmatpush2.bf16.msra.mxu0 0
    %1250 = vmatprep.subr.bf16.mxu0 0
    %1251 = vmatpush2.bf16.msra.mxu0 0
    %1252 = vmatprep.subr.bf16.mxu0 0
    %1253 = vmatpush2.bf16.msra.mxu0 0
    %1254 = vmatprep.subr.bf16.mxu0 0
    %1255 = vmatpush2.bf16.msra.mxu0 0
    %1256 = vmatprep.subr.bf16.mxu0 0
    %1257 = vmatpush2.bf16.msra.mxu0 0
    %1258 = vmatprep.mubr.bf16.mxu0 0
    %1259 = vmatmul.mubr.bf16.gmra.mxu0 %v1224
    %v1260 = vpop.f32.mrf.mxu0
    %v1261 = vadd.f32 0.0, %v1260
    %v1262 = vpop.f32.mrf.mxu0
    %v1263 = vpop.f32.mrf.mxu0
    %v1264 = vadd.f32 0.0, %v1263
    %v1265 = vpop.f32.mrf.mxu0
    %1266 = vdwg.mxu0
    %1269 = vrot.lane.b32.xlu0 %v1261, 16
    %v1270 = vpop.permute.xlu0 %1269
    %1271 = vrot.lane.b32.xlu0 %v1264, 16
    %v1272 = vpop.permute.xlu0 %1271
    %v1275 = vsel %vm131, %v1136, %v1270
    %v1276 = vsel %vm131, %v1139, %v1272
    %v1277 = vpack.c.bf16 %v1276, %v1275
    %v1278 = vld [vmem:[%s2 + $0xf] sm:$0x1]
    %v1279 = vlaneseq
    %v1280 = vshrl.u32 %v1279, 7
    %v1281 = vsub.s32 0, %v1280
    %v1282 = vrot.slane %v1278, %v1281
    %1283 = vrot.lane.b32.xlu0 %v969, 32
    %v1284 = vpop.permute.xlu0 %1283
    %1285 = vrot.lane.b32.xlu0 %v970, 32
    %v1286 = vpop.permute.xlu0 %1285
    %v1290 = vsel %vm20, %v1277, 0
    %1292 = vmatprep.subr.bf16.mxu0 0
    %1293 = vmatpush1.bf16.msra.mxu0 0
    %1294 = vmatprep.subr.bf16.mxu0 0
    %1295 = vmatpush1.bf16.msra.mxu0 0
    %1296 = vmatprep.subr.bf16.mxu0 0
    %1297 = vmatpush1.bf16.msra.mxu0 0
    %1298 = vmatprep.subr.bf16.mxu0 0
    %1299 = vmatpush1.bf16.msra.mxu0 0
    %1300 = vmatprep.subr.bf16.mxu0 0
    %1301 = vmatpush1.bf16.msra.mxu0 0
    %1302 = vmatprep.subr.bf16.mxu0 0
    %1303 = vmatpush1.bf16.msra.mxu0 0
    %1304 = vmatprep.subr.bf16.mxu0 0
    %1305 = vmatpush1.bf16.msra.mxu0 %v1286
    %1306 = vmatprep.subr.bf16.mxu0 0
    %1307 = vmatpush1.bf16.msra.mxu0 %v1284
    %1308 = vmatprep.subr.bf16.mxu0 0
    %1309 = vmatpush2.bf16.msra.mxu0 0
    %1310 = vmatprep.subr.bf16.mxu0 0
    %1311 = vmatpush2.bf16.msra.mxu0 0
    %1312 = vmatprep.subr.bf16.mxu0 0
    %1313 = vmatpush2.bf16.msra.mxu0 0
    %1314 = vmatprep.subr.bf16.mxu0 0
    %1315 = vmatpush2.bf16.msra.mxu0 0
    %1316 = vmatprep.subr.bf16.mxu0 0
    %1317 = vmatpush2.bf16.msra.mxu0 0
    %1318 = vmatprep.subr.bf16.mxu0 0
    %1319 = vmatpush2.bf16.msra.mxu0 0
    %1320 = vmatprep.subr.bf16.mxu0 0
    %1321 = vmatpush2.bf16.msra.mxu0 0
    %1322 = vmatprep.subr.bf16.mxu0 0
    %1323 = vmatpush2.bf16.msra.mxu0 0
    %1324 = vmatprep.mubr.bf16.mxu0 0
    %1325 = vmatmul.mubr.bf16.gmra.mxu0 %v1290
    %v1326 = vpop.f32.mrf.mxu0
    %v1327 = vadd.f32 %v1282, %v1326
    %v1328 = vpop.f32.mrf.mxu0
    %v1329 = vpop.f32.mrf.mxu0
    %v1330 = vadd.f32 %v1282, %v1329
    %v1331 = vpop.f32.mrf.mxu0
    %1332 = vdwg.mxu0
    %v1333 = vld [vmem:[%s1 + $0x84] sm:$0xf]
    %v1334 = vld [vmem:[%s1 + $0x8c] sm:$0xf]
    %v1335 = vld [vmem:[%s1 + $0x94] sm:$0xf]
    %v1336 = vld [vmem:[%s1 + $0x9c] sm:$0xf]
    %v1337 = vpack.c.bf16 %v1330, %v1327
    %v1338 = vld [vmem:[%s2 + $0x16] sm:$0x1]
    %v1339 = vlaneseq
    %v1340 = vshrl.u32 %v1339, 7
    %v1341 = vsub.s32 0, %v1340
    %v1342 = vrot.slane %v1338, %v1341
    %v1347 = vunpack.c.l.b16 %v1333
    %v1348 = vunpack.c.l.b16 %v1334
    %v1349 = vunpack.c.l.b16 %v1335
    %v1350 = vunpack.c.l.b16 %v1336
    %v1351 = vpack.c.b16 %v1348, %v1347
    %v1352 = vpack.c.b16 %v1350, %v1349
    %1353 = vrot.lane.b32.xlu0 %v1351, 64
    %v1354 = vpop.permute.xlu0 %1353
    %1355 = vrot.lane.b32.xlu0 %v1352, 64
    %v1356 = vpop.permute.xlu0 %1355
    %v1360 = vsel %vm20, %v1337, 0
    %1362 = vmatprep.subr.bf16.mxu0 0
    %1363 = vmatpush1.bf16.msra.mxu0 0
    %1364 = vmatprep.subr.bf16.mxu0 0
    %1365 = vmatpush1.bf16.msra.mxu0 0
    %1366 = vmatprep.subr.bf16.mxu0 0
    %1367 = vmatpush1.bf16.msra.mxu0 0
    %1368 = vmatprep.subr.bf16.mxu0 0
    %1369 = vmatpush1.bf16.msra.mxu0 0
    %1370 = vmatprep.subr.bf16.mxu0 0
    %1371 = vmatpush1.bf16.msra.mxu0 0
    %1372 = vmatprep.subr.bf16.mxu0 0
    %1373 = vmatpush1.bf16.msra.mxu0 0
    %1374 = vmatprep.subr.bf16.mxu0 0
    %1375 = vmatpush1.bf16.msra.mxu0 %v1356
    %1376 = vmatprep.subr.bf16.mxu0 0
    %1377 = vmatpush1.bf16.msra.mxu0 %v1354
    %1378 = vmatprep.subr.bf16.mxu0 0
    %1379 = vmatpush2.bf16.msra.mxu0 0
    %1380 = vmatprep.subr.bf16.mxu0 0
    %1381 = vmatpush2.bf16.msra.mxu0 0
    %1382 = vmatprep.subr.bf16.mxu0 0
    %1383 = vmatpush2.bf16.msra.mxu0 0
    %1384 = vmatprep.subr.bf16.mxu0 0
    %1385 = vmatpush2.bf16.msra.mxu0 0
    %1386 = vmatprep.subr.bf16.mxu0 0
    %1387 = vmatpush2.bf16.msra.mxu0 0
    %1388 = vmatprep.subr.bf16.mxu0 0
    %1389 = vmatpush2.bf16.msra.mxu0 0
    %1390 = vmatprep.subr.bf16.mxu0 0
    %1391 = vmatpush2.bf16.msra.mxu0 0
    %1392 = vmatprep.subr.bf16.mxu0 0
    %1393 = vmatpush2.bf16.msra.mxu0 0
    %1394 = vmatprep.mubr.bf16.mxu0 0
    %1395 = vmatmul.mubr.bf16.gmra.mxu0 %v1360
    %v1396 = vpop.f32.mrf.mxu0
    %v1397 = vadd.f32 %v1342, %v1396
    %v1398 = vpop.f32.mrf.mxu0
    %v1399 = vpop.f32.mrf.mxu0
    %v1400 = vadd.f32 %v1342, %v1399
    %v1401 = vpop.f32.mrf.mxu0
    %1402 = vdwg.mxu0
    %v1403 = vmul.f32 %v1397, 0.5
    %v1404 = vmul.f32 %v1400, 0.5
    %v1405 = vmul.f32 %v1397, 0.70710677
    %v1406 = vmul.f32 %v1400, 0.70710677
    %v1407 = verf.f32.pop %v1405
    %v1408 = verf.f32.pop %v1406
    %v1409 = vadd.f32 %v1407, 1.0
    %v1410 = vadd.f32 %v1408, 1.0
    %v1411 = vmul.f32 %v1403, %v1409
    %v1412 = vmul.f32 %v1404, %v1410
    %v1413 = vld [vmem:[%s1 + $0xe0] sm:$0xf]
    %v1414 = vld [vmem:[%s1 + $0xe8] sm:$0xf]
    %v1415 = vpack.c.bf16 %v1412, %v1411
    %v1418 = vunpack.c.l.b16 %v1413
    %v1419 = vunpack.c.l.b16 %v1414
    %v1420 = vpack.c.b16 %v1419, %v1418
    %v1423 = vsel %vm131, %v1415, 0
    %1425 = vmatprep.subr.bf16.mxu0 0
    %1426 = vmatpush1.bf16.msra.mxu0 0
    %1427 = vmatprep.subr.bf16.mxu0 0
    %1428 = vmatpush1.bf16.msra.mxu0 0
    %1429 = vmatprep.subr.bf16.mxu0 0
    %1430 = vmatpush1.bf16.msra.mxu0 0
    %1431 = vmatprep.subr.bf16.mxu0 0
    %1432 = vmatpush1.bf16.msra.mxu0 0
    %1433 = vmatprep.subr.bf16.mxu0 0
    %1434 = vmatpush1.bf16.msra.mxu0 0
    %1435 = vmatprep.subr.bf16.mxu0 0
    %1436 = vmatpush1.bf16.msra.mxu0 0
    %1437 = vmatprep.subr.bf16.mxu0 0
    %1438 = vmatpush1.bf16.msra.mxu0 0
    %1439 = vmatprep.subr.bf16.mxu0 0
    %1440 = vmatpush1.bf16.msra.mxu0 %v1420
    %1441 = vmatprep.subr.bf16.mxu0 0
    %1442 = vmatpush2.bf16.msra.mxu0 0
    %1443 = vmatprep.subr.bf16.mxu0 0
    %1444 = vmatpush2.bf16.msra.mxu0 0
    %1445 = vmatprep.subr.bf16.mxu0 0
    %1446 = vmatpush2.bf16.msra.mxu0 0
    %1447 = vmatprep.subr.bf16.mxu0 0
    %1448 = vmatpush2.bf16.msra.mxu0 0
    %1449 = vmatprep.subr.bf16.mxu0 0
    %1450 = vmatpush2.bf16.msra.mxu0 0
    %1451 = vmatprep.subr.bf16.mxu0 0
    %1452 = vmatpush2.bf16.msra.mxu0 0
    %1453 = vmatprep.subr.bf16.mxu0 0
    %1454 = vmatpush2.bf16.msra.mxu0 0
    %1455 = vmatprep.subr.bf16.mxu0 0
    %1456 = vmatpush2.bf16.msra.mxu0 0
    %1457 = vmatprep.mubr.bf16.mxu0 0
    %1458 = vmatmul.mubr.bf16.gmra.mxu0 %v1423
    %v1459 = vpop.f32.mrf.mxu0
    %v1460 = vadd.f32 0.0, %v1459
    %v1461 = vpop.f32.mrf.mxu0
    %v1462 = vpop.f32.mrf.mxu0
    %v1463 = vadd.f32 0.0, %v1462
    %v1464 = vpop.f32.mrf.mxu0
    %1465 = vdwg.mxu0
    %v1466 = vadd.f32 %v1327, %v1460
    %v1467 = vadd.f32 %v1330, %v1463
    %v1468 = vld [vmem:[%s2 + $0x17] sm:$0x1]
    %v1469 = vlaneseq
    %v1470 = vshrl.u32 %v1469, 7
    %v1471 = vsub.s32 0, %v1470
    %v1472 = vrot.slane %v1468, %v1471
    %v1473 = vadd.f32 %v1466, %v1472
    %v1474 = vadd.f32 %v1467, %v1472
    %v1475 = vadd.f32 %v1473, %v949
    %v1476 = vadd.f32 %v1474, %v950
    %v1477 = vld [vmem:[%s2 + $0x10] sm:$0x1]
    %v1478 = vld [vmem:[%s2 + $0x11] sm:$0x1]
    %v1479 = vsel %vm20, %v1475, 0.0
    %1480 = vadd.xlane.f32.xlu0 %v1479
    %v1481 = vpop.xlane.xlu0 %1480
    %v1482 = vsel %vm20, %v1476, 0.0
    %1483 = vadd.xlane.f32.xlu0 %v1482
    %v1484 = vpop.xlane.xlu0 %1483
    %v1485 = vmul.f32 %v1481, %v27
    %v1486 = vmul.f32 %v1484, %v27
    %v1487 = vsub.f32 %v1475, %v1485
    %v1488 = vsub.f32 %v1476, %v1486
    %v1489 = vmul.f32 %v1487, %v1487
    %v1490 = vmul.f32 %v1488, %v1488
    %v1491 = vsel %vm20, %v1489, 0.0
    %1492 = vadd.xlane.f32.xlu0 %v1491
    %v1493 = vpop.xlane.xlu0 %1492
    %v1494 = vsel %vm20, %v1490, 0.0
    %1495 = vadd.xlane.f32.xlu0 %v1494
    %v1496 = vpop.xlane.xlu0 %1495
    %v1497 = vmul.f32 %v1493, %v27
    %v1498 = vmul.f32 %v1496, %v27
    %v1499 = vadd.f32 %v1497, 1e-12
    %v1500 = vadd.f32 %v1498, 1e-12
    %v1501 = vrsqrt.pop %v1499
    %v1502 = vrsqrt.pop %v1500
    %v1503 = vmul.f32 %v1487, %v1501
    %v1504 = vmul.f32 %v1488, %v1502
    %v1505 = vlaneseq
    %v1506 = vshrl.u32 %v1505, 7
    %v1507 = vsub.s32 0, %v1506
    %v1508 = vrot.slane %v1477, %v1507
    %v1509 = vmul.f32 %v1503, %v1508
    %v1510 = vmul.f32 %v1504, %v1508
    %v1511 = vlaneseq
    %v1512 = vshrl.u32 %v1511, 7
    %v1513 = vsub.s32 0, %v1512
    %v1514 = vrot.slane %v1478, %v1513
    %v1515 = vadd.f32 %v1509, %v1514
    %v1516 = vadd.f32 %v1510, %v1514
    %v1517 = vpack.c.bf16 %v1516, %v1515
    %v1518 = vld [vmem:[%s2 + $0x12] sm:$0x1]
    %v1519 = vlaneseq
    %v1520 = vshrl.u32 %v1519, 7
    %v1521 = vsub.s32 0, %v1520
    %v1522 = vrot.slane %v1518, %v1521
    %v1526 = vsel %vm20, %v1517, 0
    %1528 = vmatprep.subr.bf16.mxu0 0
    %1529 = vmatpush1.bf16.msra.mxu0 0
    %1530 = vmatprep.subr.bf16.mxu0 0
    %1531 = vmatpush1.bf16.msra.mxu0 0
    %1532 = vmatprep.subr.bf16.mxu0 0
    %1533 = vmatpush1.bf16.msra.mxu0 0
    %1534 = vmatprep.subr.bf16.mxu0 0
    %1535 = vmatpush1.bf16.msra.mxu0 0
    %1536 = vmatprep.subr.bf16.mxu0 0
    %1537 = vmatpush1.bf16.msra.mxu0 0
    %1538 = vmatprep.subr.bf16.mxu0 0
    %1539 = vmatpush1.bf16.msra.mxu0 0
    %1540 = vmatprep.subr.bf16.mxu0 0
    %1541 = vmatpush1.bf16.msra.mxu0 %v1352
    %1542 = vmatprep.subr.bf16.mxu0 0
    %1543 = vmatpush1.bf16.msra.mxu0 %v1351
    %1544 = vmatprep.subr.bf16.mxu0 0
    %1545 = vmatpush2.bf16.msra.mxu0 0
    %1546 = vmatprep.subr.bf16.mxu0 0
    %1547 = vmatpush2.bf16.msra.mxu0 0
    %1548 = vmatprep.subr.bf16.mxu0 0
    %1549 = vmatpush2.bf16.msra.mxu0 0
    %1550 = vmatprep.subr.bf16.mxu0 0
    %1551 = vmatpush2.bf16.msra.mxu0 0
    %1552 = vmatprep.subr.bf16.mxu0 0
    %1553 = vmatpush2.bf16.msra.mxu0 0
    %1554 = vmatprep.subr.bf16.mxu0 0
    %1555 = vmatpush2.bf16.msra.mxu0 0
    %1556 = vmatprep.subr.bf16.mxu0 0
    %1557 = vmatpush2.bf16.msra.mxu0 0
    %1558 = vmatprep.subr.bf16.mxu0 0
    %1559 = vmatpush2.bf16.msra.mxu0 0
    %1560 = vmatprep.mubr.bf16.mxu0 0
    %1561 = vmatmul.mubr.bf16.gmra.mxu0 %v1526
    %v1562 = vpop.f32.mrf.mxu0
    %v1563 = vadd.f32 %v1522, %v1562
    %v1564 = vpop.f32.mrf.mxu0
    %v1565 = vpop.f32.mrf.mxu0
    %v1566 = vadd.f32 %v1522, %v1565
    %v1567 = vpop.f32.mrf.mxu0
    %1568 = vdwg.mxu0
    %v1569 = vmul.f32 %v1563, 0.5
    %v1570 = vmul.f32 %v1566, 0.5
    %v1571 = vmul.f32 %v1563, 0.70710677
    %v1572 = vmul.f32 %v1566, 0.70710677
    %v1573 = verf.f32.pop %v1571
    %v1574 = verf.f32.pop %v1572
    %v1575 = vadd.f32 %v1573, 1.0
    %v1576 = vadd.f32 %v1574, 1.0
    %v1577 = vmul.f32 %v1569, %v1575
    %v1578 = vmul.f32 %v1570, %v1576
    %v1579 = vld [vmem:[%s1 + $0xa0] sm:$0xf]
    %v1580 = vld [vmem:[%s1 + $0xa8] sm:$0xf]
    %v1581 = vld [vmem:[%s1 + $0xb0] sm:$0xf]
    %v1582 = vld [vmem:[%s1 + $0xb8] sm:$0xf]
    %v1583 = vld [vmem:[%s1 + $0xc0] sm:$0xf]
    %v1584 = vld [vmem:[%s1 + $0xc8] sm:$0xf]
    %v1585 = vld [vmem:[%s1 + $0xd0] sm:$0xf]
    %v1586 = vld [vmem:[%s1 + $0xd8] sm:$0xf]
    %v1587 = vpack.c.bf16 %v1578, %v1577
    %v1588 = vld [vmem:[%s2 + $0x13] sm:$0x1]
    %v1589 = vlaneseq
    %v1590 = vshrl.u32 %v1589, 7
    %v1591 = vsub.s32 0, %v1590
    %v1592 = vrot.slane %v1588, %v1591
    %v1601 = vunpack.c.l.b16 %v1579
    %v1602 = vunpack.c.l.b16 %v1580
    %v1603 = vunpack.c.l.b16 %v1581
    %v1604 = vunpack.c.l.b16 %v1582
    %v1605 = vunpack.c.l.b16 %v1583
    %v1606 = vunpack.c.l.b16 %v1584
    %v1607 = vunpack.c.l.b16 %v1585
    %v1608 = vunpack.c.l.b16 %v1586
    %v1609 = vpack.c.b16 %v1602, %v1601
    %v1610 = vpack.c.b16 %v1604, %v1603
    %v1611 = vpack.c.b16 %v1606, %v1605
    %v1612 = vpack.c.b16 %v1608, %v1607
    %v1618 = vsel %vm736, %v1587, 0
    %1620 = vmatprep.subr.bf16.mxu0 0
    %1621 = vmatpush1.bf16.msra.mxu0 0
    %1622 = vmatprep.subr.bf16.mxu0 0
    %1623 = vmatpush1.bf16.msra.mxu0 0
    %1624 = vmatprep.subr.bf16.mxu0 0
    %1625 = vmatpush1.bf16.msra.mxu0 0
    %1626 = vmatprep.subr.bf16.mxu0 0
    %1627 = vmatpush1.bf16.msra.mxu0 0
    %1628 = vmatprep.subr.bf16.mxu0 0
    %1629 = vmatpush1.bf16.msra.mxu0 %v1612
    %1630 = vmatprep.subr.bf16.mxu0 0
    %1631 = vmatpush1.bf16.msra.mxu0 %v1611
    %1632 = vmatprep.subr.bf16.mxu0 0
    %1633 = vmatpush1.bf16.msra.mxu0 %v1610
    %1634 = vmatprep.subr.bf16.mxu0 0
    %1635 = vmatpush1.bf16.msra.mxu0 %v1609
    %1636 = vmatprep.subr.bf16.mxu0 0
    %1637 = vmatpush2.bf16.msra.mxu0 0
    %1638 = vmatprep.subr.bf16.mxu0 0
    %1639 = vmatpush2.bf16.msra.mxu0 0
    %1640 = vmatprep.subr.bf16.mxu0 0
    %1641 = vmatpush2.bf16.msra.mxu0 0
    %1642 = vmatprep.subr.bf16.mxu0 0
    %1643 = vmatpush2.bf16.msra.mxu0 0
    %1644 = vmatprep.subr.bf16.mxu0 0
    %1645 = vmatpush2.bf16.msra.mxu0 0
    %1646 = vmatprep.subr.bf16.mxu0 0
    %1647 = vmatpush2.bf16.msra.mxu0 0
    %1648 = vmatprep.subr.bf16.mxu0 0
    %1649 = vmatpush2.bf16.msra.mxu0 0
    %1650 = vmatprep.subr.bf16.mxu0 0
    %1651 = vmatpush2.bf16.msra.mxu0 0
    %1652 = vmatprep.mubr.bf16.mxu0 0
    %1653 = vmatmul.mubr.bf16.gmra.mxu0 %v1618
    %v1654 = vpop.f32.mrf.mxu0
    %v1655 = vadd.f32 %v1592, %v1654
    %v1656 = vpop.f32.mrf.mxu0
    %v1657 = vpop.f32.mrf.mxu0
    %v1658 = vadd.f32 %v1592, %v1657
    %v1659 = vpop.f32.mrf.mxu0
    %1660 = vdwg.mxu0
    %v1661 = vpack.c.bf16 %v1658, %v1655
    %v1662 = vld [vmem:[%s2 + $0x18] sm:$0x1]
    %v1663 = vlaneseq
    %v1664 = vshrl.u32 %v1663, 7
    %v1665 = vsub.s32 0, %v1664
    %v1666 = vrot.slane %v1662, %v1665
    %1667 = vrot.lane.b32.xlu0 %v1351, 48
    %v1668 = vpop.permute.xlu0 %1667
    %1669 = vrot.lane.b32.xlu0 %v1352, 48
    %v1670 = vpop.permute.xlu0 %1669
    %v1674 = vsel %vm20, %v1661, 0
    %1676 = vmatprep.subr.bf16.mxu0 0
    %1677 = vmatpush1.bf16.msra.mxu0 0
    %1678 = vmatprep.subr.bf16.mxu0 0
    %1679 = vmatpush1.bf16.msra.mxu0 0
    %1680 = vmatprep.subr.bf16.mxu0 0
    %1681 = vmatpush1.bf16.msra.mxu0 0
    %1682 = vmatprep.subr.bf16.mxu0 0
    %1683 = vmatpush1.bf16.msra.mxu0 0
    %1684 = vmatprep.subr.bf16.mxu0 0
    %1685 = vmatpush1.bf16.msra.mxu0 0
    %1686 = vmatprep.subr.bf16.mxu0 0
    %1687 = vmatpush1.bf16.msra.mxu0 0
    %1688 = vmatprep.subr.bf16.mxu0 0
    %1689 = vmatpush1.bf16.msra.mxu0 %v1670
    %1690 = vmatprep.subr.bf16.mxu0 0
    %1691 = vmatpush1.bf16.msra.mxu0 %v1668
    %1692 = vmatprep.subr.bf16.mxu0 0
    %1693 = vmatpush2.bf16.msra.mxu0 0
    %1694 = vmatprep.subr.bf16.mxu0 0
    %1695 = vmatpush2.bf16.msra.mxu0 0
    %1696 = vmatprep.subr.bf16.mxu0 0
    %1697 = vmatpush2.bf16.msra.mxu0 0
    %1698 = vmatprep.subr.bf16.mxu0 0
    %1699 = vmatpush2.bf16.msra.mxu0 0
    %1700 = vmatprep.subr.bf16.mxu0 0
    %1701 = vmatpush2.bf16.msra.mxu0 0
    %1702 = vmatprep.subr.bf16.mxu0 0
    %1703 = vmatpush2.bf16.msra.mxu0 0
    %1704 = vmatprep.subr.bf16.mxu0 0
    %1705 = vmatpush2.bf16.msra.mxu0 0
    %1706 = vmatprep.subr.bf16.mxu0 0
    %1707 = vmatpush2.bf16.msra.mxu0 0
    %1708 = vmatprep.mubr.bf16.mxu0 0
    %1709 = vmatmul.mubr.bf16.gmra.mxu0 %v1674
    %v1710 = vpop.f32.mrf.mxu0
    %v1711 = vadd.f32 %v1666, %v1710
    %v1712 = vpop.f32.mrf.mxu0
    %v1713 = vpop.f32.mrf.mxu0
    %v1714 = vadd.f32 %v1666, %v1713
    %v1715 = vpop.f32.mrf.mxu0
    %1716 = vdwg.mxu0
    %v1717 = vmul.f32 %v1711, 0.5
    %v1718 = vmul.f32 %v1714, 0.5
    %v1719 = vmul.f32 %v1711, 0.70710677
    %v1720 = vmul.f32 %v1714, 0.70710677
    %v1721 = verf.f32.pop %v1719
    %v1722 = verf.f32.pop %v1720
    %v1723 = vadd.f32 %v1721, 1.0
    %v1724 = vadd.f32 %v1722, 1.0
    %v1725 = vmul.f32 %v1717, %v1723
    %v1726 = vmul.f32 %v1718, %v1724
    %v1727 = vld [vmem:[%s1 + $0xf0] sm:$0xf]
    %v1728 = vld [vmem:[%s1 + $0xf8] sm:$0xf]
    %v1729 = vpack.c.bf16 %v1726, %v1725
    %v1732 = vunpack.c.l.b16 %v1727
    %v1733 = vunpack.c.l.b16 %v1728
    %v1734 = vpack.c.b16 %v1733, %v1732
    %v1737 = vsel %vm131, %v1729, 0
    %1739 = vmatprep.subr.bf16.mxu0 0
    %1740 = vmatpush1.bf16.msra.mxu0 0
    %1741 = vmatprep.subr.bf16.mxu0 0
    %1742 = vmatpush1.bf16.msra.mxu0 0
    %1743 = vmatprep.subr.bf16.mxu0 0
    %1744 = vmatpush1.bf16.msra.mxu0 0
    %1745 = vmatprep.subr.bf16.mxu0 0
    %1746 = vmatpush1.bf16.msra.mxu0 0
    %1747 = vmatprep.subr.bf16.mxu0 0
    %1748 = vmatpush1.bf16.msra.mxu0 0
    %1749 = vmatprep.subr.bf16.mxu0 0
    %1750 = vmatpush1.bf16.msra.mxu0 0
    %1751 = vmatprep.subr.bf16.mxu0 0
    %1752 = vmatpush1.bf16.msra.mxu0 0
    %1753 = vmatprep.subr.bf16.mxu0 0
    %1754 = vmatpush1.bf16.msra.mxu0 %v1734
    %1755 = vmatprep.subr.bf16.mxu0 0
    %1756 = vmatpush2.bf16.msra.mxu0 0
    %1757 = vmatprep.subr.bf16.mxu0 0
    %1758 = vmatpush2.bf16.msra.mxu0 0
    %1759 = vmatprep.subr.bf16.mxu0 0
    %1760 = vmatpush2.bf16.msra.mxu0 0
    %1761 = vmatprep.subr.bf16.mxu0 0
    %1762 = vmatpush2.bf16.msra.mxu0 0
    %1763 = vmatprep.subr.bf16.mxu0 0
    %1764 = vmatpush2.bf16.msra.mxu0 0
    %1765 = vmatprep.subr.bf16.mxu0 0
    %1766 = vmatpush2.bf16.msra.mxu0 0
    %1767 = vmatprep.subr.bf16.mxu0 0
    %1768 = vmatpush2.bf16.msra.mxu0 0
    %1769 = vmatprep.subr.bf16.mxu0 0
    %1770 = vmatpush2.bf16.msra.mxu0 0
    %1771 = vmatprep.mubr.bf16.mxu0 0
    %1772 = vmatmul.mubr.bf16.gmra.mxu0 %v1737
    %v1773 = vpop.f32.mrf.mxu0
    %v1774 = vadd.f32 0.0, %v1773
    %v1775 = vpop.f32.mrf.mxu0
    %v1776 = vpop.f32.mrf.mxu0
    %v1777 = vadd.f32 0.0, %v1776
    %v1778 = vpop.f32.mrf.mxu0
    %1779 = vdwg.mxu0
    %v1780 = vadd.f32 %v1655, %v1774
    %v1781 = vadd.f32 %v1658, %v1777
    %v1782 = vld [vmem:[%s2 + $0x19] sm:$0x1]
    %v1783 = vlaneseq
    %v1784 = vshrl.u32 %v1783, 7
    %v1785 = vsub.s32 0, %v1784
    %v1786 = vrot.slane %v1782, %v1785
    %v1787 = vadd.f32 %v1780, %v1786
    %v1788 = vadd.f32 %v1781, %v1786
    %v1789 = vadd.f32 %v1787, %v1515
    %v1790 = vadd.f32 %v1788, %v1516
    %v1791 = vld [vmem:[%s2 + $0x14] sm:$0x1]
    %v1792 = vld [vmem:[%s2 + $0x15] sm:$0x1]
    %v1793 = vsel %vm20, %v1789, 0.0
    %1794 = vadd.xlane.f32.xlu0 %v1793
    %v1795 = vpop.xlane.xlu0 %1794
    %v1796 = vsel %vm20, %v1790, 0.0
    %1797 = vadd.xlane.f32.xlu0 %v1796
    %v1798 = vpop.xlane.xlu0 %1797
    %v1799 = vmul.f32 %v1795, %v27
    %v1800 = vmul.f32 %v1798, %v27
    %v1801 = vsub.f32 %v1789, %v1799
    %v1802 = vsub.f32 %v1790, %v1800
    %v1803 = vmul.f32 %v1801, %v1801
    %v1804 = vmul.f32 %v1802, %v1802
    %v1805 = vsel %vm20, %v1803, 0.0
    %1806 = vadd.xlane.f32.xlu0 %v1805
    %v1807 = vpop.xlane.xlu0 %1806
    %v1808 = vsel %vm20, %v1804, 0.0
    %1809 = vadd.xlane.f32.xlu0 %v1808
    %v1810 = vpop.xlane.xlu0 %1809
    %v1811 = vmul.f32 %v1807, %v27
    %v1812 = vmul.f32 %v1810, %v27
    %v1813 = vadd.f32 %v1811, 1e-12
    %v1814 = vadd.f32 %v1812, 1e-12
    %v1815 = vrsqrt.pop %v1813
    %v1816 = vrsqrt.pop %v1814
    %v1817 = vmul.f32 %v1801, %v1815
    %v1818 = vmul.f32 %v1802, %v1816
    %v1819 = vlaneseq
    %v1820 = vshrl.u32 %v1819, 7
    %v1821 = vsub.s32 0, %v1820
    %v1822 = vrot.slane %v1791, %v1821
    %v1823 = vmul.f32 %v1817, %v1822
    %v1824 = vmul.f32 %v1818, %v1822
    %v1825 = vlaneseq
    %v1826 = vshrl.u32 %v1825, 7
    %v1827 = vsub.s32 0, %v1826
    %v1828 = vrot.slane %v1792, %v1827
    %v1829 = vadd.f32 %v1823, %v1828
    %v1830 = vadd.f32 %v1824, %v1828
    %v1831 = vpack.c.bf16 %v60, %v60
    %v1832 = vpack.c.bf16 %v1830, %v1829
    %1834 = vrot.lane.b32.xlu0 %v1831, 80
    %v1835 = vpop.permute.xlu0 %1834
    %v1837 = vsel %vm131, %v1835, 0
    %1839 = vmatprep.subr.bf16.mxu0 0
    %1840 = vmatpush1.bf16.msra.mxu0 0
    %1841 = vmatprep.subr.bf16.mxu0 0
    %1842 = vmatpush1.bf16.msra.mxu0 0
    %1843 = vmatprep.subr.bf16.mxu0 0
    %1844 = vmatpush1.bf16.msra.mxu0 0
    %1845 = vmatprep.subr.bf16.mxu0 0
    %1846 = vmatpush1.bf16.msra.mxu0 0
    %1847 = vmatprep.subr.bf16.mxu0 0
    %1848 = vmatpush1.bf16.msra.mxu0 0
    %1849 = vmatprep.subr.bf16.mxu0 0
    %1850 = vmatpush1.bf16.msra.mxu0 0
    %1851 = vmatprep.subr.bf16.mxu0 0
    %1852 = vmatpush1.bf16.msra.mxu0 0
    %1853 = vmatprep.subr.bf16.mxu0 0
    %1854 = vmatpush1.bf16.msra.mxu0 %v1832
    %1855 = vmatprep.subr.bf16.mxu0 0
    %1856 = vmatpush2.bf16.msra.mxu0 0
    %1857 = vmatprep.subr.bf16.mxu0 0
    %1858 = vmatpush2.bf16.msra.mxu0 0
    %1859 = vmatprep.subr.bf16.mxu0 0
    %1860 = vmatpush2.bf16.msra.mxu0 0
    %1861 = vmatprep.subr.bf16.mxu0 0
    %1862 = vmatpush2.bf16.msra.mxu0 0
    %1863 = vmatprep.subr.bf16.mxu0 0
    %1864 = vmatpush2.bf16.msra.mxu0 0
    %1865 = vmatprep.subr.bf16.mxu0 0
    %1866 = vmatpush2.bf16.msra.mxu0 0
    %1867 = vmatprep.subr.bf16.mxu0 0
    %1868 = vmatpush2.bf16.msra.mxu0 0
    %1869 = vmatprep.subr.bf16.mxu0 0
    %1870 = vmatpush2.bf16.msra.mxu0 0
    %1871 = vmatprep.mubr.bf16.mxu0 0
    %1872 = vmatmul.mubr.bf16.gmra.mxu0 %v1837
    %v1873 = vpop.f32.mrf.mxu0
    %v1874 = vadd.f32 0.0, %v1873
    %v1875 = vpop.f32.mrf.mxu0
    %v1876 = vpop.f32.mrf.mxu0
    %v1877 = vpop.f32.mrf.mxu0
    %1878 = vdwg.mxu0
    %v1879 = vsel %vm20, %v1874, 0.0
    %1880 = vst [vmem:[#allocation2] sm:$0xff] %v1879
    // Predicated region
    $region14: #{adapter_pgn_bert_forward.1} parent=1 // pred_check
      _
    $region15: #{adapter_pgn_bert_forward.1} parent=1 // pred_check_branch
      %1882 = sbr.rel (0) target = $region17
    $region16: #{adapter_pgn_bert_forward.1} parent=1 // pred_region
      %s1884 = ssub.s32 128, 128
      %1885 = vsyncadd [#allocation3], %s1884
      %s1887 = sshll.u32 [#allocation2], 4
      %s1888 = int_to_ptr.vmem [resolvable:$true] %s1887
      %1890 = dma.vmem_to_hbm [thread:$0]  %s1888, 128, %s3, [#allocation3]
    $region17: #{adapter_pgn_bert_forward.1} parent=1 // pred_fallthru
      _
    // Predicated region
    $region18: #{adapter_pgn_bert_forward.1} parent=1 // pred_check
      _
    $region19: #{adapter_pgn_bert_forward.1} parent=1 // pred_check_branch
      %1892 = sbr.rel (0) target = $region21
    $region20: #{adapter_pgn_bert_forward.1} parent=1 // pred_region
      %1893 = dma.done [#allocation3], 128
    $region21: #{adapter_pgn_bert_forward.1} parent=1 // pred_fallthru
      _
    %1894 = vsyncpa [#allocation3], 1

</llo_original>
